<compile_context>
chip_gen: v7x
topology: tpu7x:2x2x1
jax: 0.10.0
libtpu: 0.0.40
codegen_flags: <defaults>
</compile_context>

<pallas_src>
import math
import numpy as np
import jax
import jax.numpy as jnp
from jax import lax
from jax.experimental import pallas as pl
from jax.experimental.pallas import tpu as pltpu

# ---------------- config (mirrors DecoderConfig) ----------------
BATCH  = 2
SEQ    = 8
EMB_D  = 32
HEADS  = 4
HEAD_D = EMB_D // HEADS
FF_D   = 64
EPS    = 1e-8            # RMSNorm eps (reference formula: x / (rms + eps))
RMS_EPS = 1e-12          # guard inside rsqrt (kernel); |diff| vs reference ~1e-8
N_TOK  = BATCH * SEQ
NEG    = -1e30           # additive mask value (finite, exp underflows to 0)
G_QKV  = 3 * HEADS       # 12 per-head q/k/v projections
G_ALL  = 4 * HEADS       # + 4 per-head output projections -> 16 slab entries
EW     = EMB_D + 1       # weight columns incl. bias column

# ---------------- advisory cost estimate (static) ----------------
_FLOPS = (2 * G_QKV * N_TOK * EW * HEAD_D                 # per-head QKV proj
          + 2 * HEADS * N_TOK * N_TOK * HEAD_D * 2        # QK^T + PV
          + 2 * HEADS * N_TOK * HEAD_D * EMB_D            # per-head out proj
          + 2 * N_TOK * EMB_D * FF_D * 2)                 # MLP
_TRANSC = HEADS * N_TOK * N_TOK + N_TOK * FF_D + 2 * N_TOK + HEADS * N_TOK
_BYTES = 4 * (2 * N_TOK * EMB_D + G_ALL * HEAD_D * EW
              + 2 * (EMB_D + 2) * FF_D + N_TOK * N_TOK)


def decoder_layer_kernel(x_ref,        # (N, E)        flattened tokens
                         attn_w_ref,   # (16, 8, 33)   per-head QKV(+bias col) & Wo slab
                         mlp_w_ref,    # (2, 34, 64)   [w1|b1] , [w2^T|b2|bo]
                         mask_ref,     # (N, N)        additive block-causal bias
                         o_ref):       # (N, E)
    x = x_ref[...]                                        # (16, 32)

    # ---------------- RMSNorm 1 (gain g1 folded into QKV weights) ----------------
    r1 = lax.rsqrt(jnp.mean(x * x, axis=-1, keepdims=True) + RMS_EPS)      # EUP
    x1 = x * r1                                           # (16, 32)

    # ---------------- per-head QKV projection (bias via ones column) -------------
    aw = attn_w_ref[...]                                  # (16, 8, 33)
    w_qkv = aw[0:G_QKV]                                   # (12, 8, 33)  [g, d, e']
    wo_h  = aw[G_QKV:G_ALL, :, 0:EMB_D]                   # (4, 8, 32)   [h, d, e]

    x1a = jnp.concatenate([x1, jnp.ones((N_TOK, 1), jnp.float32)], axis=-1)  # (16, 33)
    x1b = jnp.broadcast_to(x1a[None], (G_QKV, N_TOK, EW))                    # (12, 16, 33)
    # 'gne,gde->gnd' : canonical leading-batch, contract-last-of-both
    qkvh = lax.dot_general(x1b, w_qkv, (((2,), (2,)), ((0,), (0,))),
                           preferred_element_type=jnp.float32)               # (12, 16, 8)
    q = qkvh[0:HEADS]                                      # (4, 16, 8)  (1/sqrt(hd) folded)
    k = qkvh[HEADS:2 * HEADS]
    v = qkvh[2 * HEADS:3 * HEADS]

    # ---------------- causal attention, heads batched, batches masked ------------
    # 'hqd,hkd->hqk'
    s = lax.dot_general(q, k, (((2,), (2,)), ((0,), (0,))),
                        preferred_element_type=jnp.float32)                  # (4, 16, 16)
    s = s + mask_ref[...]                                  # 0 / -1e30 block-causal bias
    s = s - jnp.max(s, axis=-1, keepdims=True)
    e = jnp.exp(s)
    denom = jnp.sum(e, axis=-1, keepdims=True)             # (4, 16, 1)
    r = pl.reciprocal(denom, approx=True)                  # EUP vrcp
    r = r * (2.0 - denom * r)                              # one Newton step (err ~1e-7)
    p = e * r
    # 'hqk,hkd->hqd'
    ctx = lax.dot_general(p, v, (((2,), (1,)), ((0,), (0,))),
                          preferred_element_type=jnp.float32)                # (4, 16, 8)

    # ---------------- per-head output projection, summed over heads --------------
    # 'hnd,hde->hne'
    attn_h = lax.dot_general(ctx, wo_h, (((2,), (1,)), ((0,), (0,))),
                             preferred_element_type=jnp.float32)             # (4, 16, 32)
    mw = mlp_w_ref[...]                                    # (2, 34, 64)
    bo = mw[1, 33:34, 0:EMB_D]                             # (1, 32)
    xr = x + jnp.sum(attn_h, axis=0) + bo                  # residual 1

    # ---------------- RMSNorm 2 (gain g2 folded into w1) + MLP -------------------
    r2 = lax.rsqrt(jnp.mean(xr * xr, axis=-1, keepdims=True) + RMS_EPS)
    x2 = xr * r2

    w1  = mw[0, 0:EMB_D, :]                                # (32, 64)  g2 folded
    b1  = mw[0, EMB_D:EMB_D + 1, :]                        # (1, 64)
    w2t = mw[1, 0:EMB_D, :]                                # (32, 64)  = w2^T
    b2  = mw[1, EMB_D:EMB_D + 1, 0:EMB_D]                  # (1, 32)

    h1 = jnp.dot(x2, w1, preferred_element_type=jnp.float32) + b1            # (16, 64)
    h1 = jax.nn.gelu(h1, approximate=True)                 # tanh GELU -> EUP
    # 'nf,ef->ne'  (A @ B^T form)
    h2 = lax.dot_general(h1, w2t, (((1,), (1,)), ((), ())),
                         preferred_element_type=jnp.float32) + b2            # (16, 32)

    o_ref[...] = xr + h2                                   # residual 2


def fold_params(params):
    """One-time wrapper-side packing (call once, outside the per-step path)."""
    (wqkv_t, bqkv, wo_t, bo, g1, g2, w1_t, b1, w2_t, b2) = params
    hd = HEAD_D

    # ---- attention slab (16, 8, 33): 12 per-head QKV projections (+bias col),
    #      then 4 per-head output projections -------------------------------------
    w_eff = wqkv_t * g1.reshape(EMB_D, 1)                  # fold RMSNorm-1 gain (rows)
    w4 = w_eff.reshape(EMB_D, HEADS, 3, hd)                # [e, h, t, d]  (torch layout)
    w4 = jnp.transpose(w4, (2, 1, 3, 0))                   # [t, h, d, e]
    b4 = bqkv.reshape(HEADS, 3, hd)                        # [h, t, d]
    b4 = jnp.transpose(b4, (1, 0, 2))                      # [t, h, d]
    qscale = jnp.array([1.0 / math.sqrt(hd), 1.0, 1.0], jnp.float32)   # fold attn scale into Q
    w4 = w4 * qscale[:, None, None, None]
    b4 = b4 * qscale[:, None, None]
    qkv_blk = jnp.concatenate([w4.reshape(G_QKV, hd, EMB_D),
                               b4.reshape(G_QKV, hd, 1)], axis=-1)      # (12, 8, 33)
    wo_blk = jnp.concatenate([wo_t.reshape(HEADS, hd, EMB_D),
                              jnp.zeros((HEADS, hd, 1), jnp.float32)], axis=-1)  # (4, 8, 33)
    attn_w = jnp.concatenate([qkv_blk, wo_blk], axis=0)    # (16, 8, 33)

    # ---- MLP slab (2, 34, 64): [0]=w1(g2 folded)+b1, [1]=w2^T + b2 + bo ----------
    w1_eff = w1_t * g2.reshape(EMB_D, 1)
    zrow = jnp.zeros((1, FF_D), jnp.float32)
    blk0 = jnp.concatenate([w1_eff, b1, zrow], axis=0)     # (34, 64)
    pad = jnp.zeros((1, FF_D - EMB_D), jnp.float32)
    blk1 = jnp.concatenate([w2_t.T,
                            jnp.concatenate([b2, pad], axis=1),
                            jnp.concatenate([bo, pad], axis=1)], axis=0)  # (34, 64)
    mlp_w = jnp.stack([blk0, blk1], axis=0)                # (2, 34, 64)

    # ---- additive attention bias over the flattened 16-token axis ---------------
    tok = np.arange(N_TOK)
    same_batch = (tok[:, None] // SEQ) == (tok[None, :] // SEQ)
    causal = (tok[None, :] % SEQ) <= (tok[:, None] % SEQ)
    mask = jnp.asarray(np.where(same_batch & causal, 0.0, NEG).astype(np.float32))
    return attn_w, mlp_w, mask


@jax.jit
def decoder_layer(x, attn_w, mlp_w, mask):
    B, S, E = x.shape
    xf = x.reshape(B * S, E)
    out = pl.pallas_call(
        decoder_layer_kernel,
        out_shape=jax.ShapeDtypeStruct((N_TOK, EMB_D), jnp.float32),
        grid_spec=pltpu.PrefetchScalarGridSpec(
            num_scalar_prefetch=0,
            grid=(1,),                                     # single program on one TC
            in_specs=[
                pl.BlockSpec((N_TOK, EMB_D), lambda i: (0, 0)),
                pl.BlockSpec((G_ALL, HEAD_D, EW), lambda i: (0, 0, 0)),
                pl.BlockSpec((2, EMB_D + 2, FF_D), lambda i: (0, 0, 0)),
                pl.BlockSpec((N_TOK, N_TOK), lambda i: (0, 0)),
            ],
            out_specs=pl.BlockSpec((N_TOK, EMB_D), lambda i: (0, 0)),
        ),
        input_output_aliases={0: 0},                       # output reuses x's buffer
        compiler_params=pltpu.CompilerParams(
            dimension_semantics=("arbitrary",)),
        cost_estimate=pl.CostEstimate(flops=_FLOPS,
                                      transcendentals=_TRANSC,
                                      bytes_accessed=_BYTES),
    )(xf, attn_w, mlp_w, mask)
    return out.reshape(B, S, E)


# ---------------- pure-JAX reference (mirrors PyTorch forward, unfolded params) ----------------
def decoder_layer_ref(x, params):
    (wqkv_t, bqkv, wo_t, bo, g1, g2, w1_t, b1, w2_t, b2) = params
    B, S, E = x.shape
    hd = E // HEADS

    def rmsnorm(v, g):
        rms = jnp.sqrt(jnp.mean(v * v, axis=-1, keepdims=True))
        return v / (rms + EPS) * g

    x1 = rmsnorm(x, g1[0])
    qkv = x1 @ wqkv_t + bqkv[0]                            # (B, S, 3E)
    qkv = qkv.reshape(B, S, HEADS, 3 * hd).transpose(0, 2, 1, 3)
    q, k, v = jnp.split(qkv, 3, axis=-1)                   # each (B, H, S, hd)
    s = jnp.einsum('bhqd,bhkd->bhqk', q, k) / math.sqrt(hd)
    mask = jnp.tril(jnp.ones((S, S), dtype=bool))
    s = jnp.where(mask, s, -jnp.inf)
    p = jax.nn.softmax(s, axis=-1)
    ctx = jnp.einsum('bhqk,bhkd->bhqd', p, v)
    ctx = ctx.transpose(0, 2, 1, 3).reshape(B, S, E)
    x = x + (ctx @ wo_t + bo[0])

    x2 = rmsnorm(x, g2[0])
    h1 = jax.nn.gelu(x2 @ w1_t + b1[0], approximate=False)
    x = x + (h1 @ w2_t + b2[0])
    return x


if __name__ == "__main__":
    key = jax.random.PRNGKey(0)
    ks = jax.random.split(key, 11)

    # PyTorch weights are (out, in); stored here pre-transposed as (in, out).
    wqkv_t = jax.random.normal(ks[0], (EMB_D, 3 * EMB_D), jnp.float32) * 0.02
    bqkv   = jax.random.normal(ks[1], (1, 3 * EMB_D), jnp.float32) * 0.02
    wo_t   = jax.random.normal(ks[2], (EMB_D, EMB_D), jnp.float32) * 0.02
    bo     = jax.random.normal(ks[3], (1, EMB_D), jnp.float32) * 0.02
    # non-trivial RMSNorm gains so the weight-folding path is exercised
    g1     = 1.0 + 0.1 * jax.random.normal(ks[4], (1, EMB_D), jnp.float32)
    g2     = 1.0 + 0.1 * jax.random.normal(ks[5], (1, EMB_D), jnp.float32)
    w1_t   = jax.random.normal(ks[6], (EMB_D, FF_D), jnp.float32) * 0.02
    b1     = jax.random.normal(ks[7], (1, FF_D), jnp.float32) * 0.02
    w2_t   = jax.random.normal(ks[8], (FF_D, EMB_D), jnp.float32) * 0.02
    b2     = jax.random.normal(ks[9], (1, EMB_D), jnp.float32) * 0.02
    params = (wqkv_t, bqkv, wo_t, bo, g1, g2, w1_t, b1, w2_t, b2)

    x = jax.random.normal(ks[10], (BATCH, SEQ, EMB_D), jnp.float32)

    # one-time parameter folding / packing (hoisted out of the per-call path)
    attn_w, mlp_w, mask = fold_params(params)

    out = jax.block_until_ready(decoder_layer(x, attn_w, mlp_w, mask))
    ref = decoder_layer_ref(x, params)

    assert out.shape == (BATCH, SEQ, EMB_D)
    assert jnp.allclose(out, ref, rtol=1e-4, atol=1e-4), "mismatch vs reference"

    print("KERNEL_OK")
</pallas_src>

<mosaic_0001>
module attributes {stable_mosaic.version = 11 : i64} {
  func.func @decoder_layer_kernel(%arg0: i32, %arg1: memref<16x32xf32, #tpu.memory_space<vmem>>, %arg2: memref<16x8x33xf32, #tpu.memory_space<vmem>>, %arg3: memref<2x34x64xf32, #tpu.memory_space<vmem>>, %arg4: memref<16x16xf32, #tpu.memory_space<vmem>>, %arg5: memref<16x32xf32, #tpu.memory_space<vmem>>) attributes {dimension_semantics = [#tpu.dimension_semantics<arbitrary>], iteration_bounds = array<i64: 1>, scalar_prefetch = 0 : i64, scratch_operands = 0 : i64, tpu.core_type = #tpu.core_type<tc>, window_params = [{pipeline_mode = #tpu.pipeline_mode<synchronous>, transform_indices = @transform_0, window_bounds = array<i64: 16, 32>}, {pipeline_mode = #tpu.pipeline_mode<synchronous>, transform_indices = @transform_1, window_bounds = array<i64: 16, 8, 33>}, {pipeline_mode = #tpu.pipeline_mode<synchronous>, transform_indices = @transform_2, window_bounds = array<i64: 2, 34, 64>}, {pipeline_mode = #tpu.pipeline_mode<synchronous>, transform_indices = @transform_3, window_bounds = array<i64: 16, 16>}, {pipeline_mode = #tpu.pipeline_mode<synchronous>, transform_indices = @transform_4, window_bounds = array<i64: 16, 32>}]} {
    %c0 = arith.constant 0 : index
    %c0_0 = arith.constant 0 : index
    %0 = vector.load %arg1[%c0, %c0_0] : memref<16x32xf32, #tpu.memory_space<vmem>>, vector<16x32xf32>
    %1 = arith.mulf %0, %0 : vector<16x32xf32>
    %cst = arith.constant dense<0.000000e+00> : vector<16xf32>
    %2 = vector.multi_reduction <add>, %1, %cst [1] : vector<16x32xf32> to vector<16xf32>
    %3 = vector.shape_cast %2 : vector<16xf32> to vector<16x1xf32>
    %cst_1 = arith.constant 3.200000e+01 : f32
    %4 = vector.broadcast %cst_1 : f32 to vector<16x1xf32>
    %5 = arith.divf %3, %4 : vector<16x1xf32>
    %cst_2 = arith.constant 9.99999996E-13 : f32
    %6 = vector.broadcast %cst_2 : f32 to vector<16x1xf32>
    %7 = arith.addf %5, %6 : vector<16x1xf32>
    %8 = math.rsqrt %7 : vector<16x1xf32>
    %9 = vector.broadcast %8 : vector<16x1xf32> to vector<16x32xf32>
    %10 = arith.mulf %0, %9 : vector<16x32xf32>
    %c0_3 = arith.constant 0 : index
    %c0_4 = arith.constant 0 : index
    %c0_5 = arith.constant 0 : index
    %11 = vector.load %arg2[%c0_3, %c0_4, %c0_5] : memref<16x8x33xf32, #tpu.memory_space<vmem>>, vector<16x8x33xf32>
    %12 = vector.extract_strided_slice %11 {offsets = [0, 0, 0], sizes = [12, 8, 33], strides = [1, 1, 1]} : vector<16x8x33xf32> to vector<12x8x33xf32>
    %13 = vector.extract_strided_slice %11 {offsets = [12, 0, 0], sizes = [4, 8, 32], strides = [1, 1, 1]} : vector<16x8x33xf32> to vector<4x8x32xf32>
    %cst_6 = arith.constant 1.000000e+00 : f32
    %14 = vector.broadcast %cst_6 : f32 to vector<16x1xf32>
    %15 = tpu.concatenate %10, %14 in 1 : vector<16x32xf32>, vector<16x1xf32> -> vector<16x33xf32>
    %16 = vector.shape_cast %15 : vector<16x33xf32> to vector<1x16x33xf32>
    %17 = vector.shape_cast %16 : vector<1x16x33xf32> to vector<1x16x33xf32>
    %18 = vector.broadcast %17 : vector<1x16x33xf32> to vector<12x16x33xf32>
    %cst_7 = arith.constant dense<0.000000e+00> : vector<12x16x8xf32>
    %19 = tpu.matmul %18, %12, %cst_7 {dimension_numbers = #tpu.dot_dimension_numbers<[2], [2], [1], [1], [0, 0, 0, 1, 1, 1], [0], [0]>} : vector<12x16x33xf32>, vector<12x8x33xf32>, vector<12x16x8xf32> -> vector<12x16x8xf32>
    %20 = vector.extract_strided_slice %19 {offsets = [0, 0, 0], sizes = [4, 16, 8], strides = [1, 1, 1]} : vector<12x16x8xf32> to vector<4x16x8xf32>
    %21 = vector.extract_strided_slice %19 {offsets = [4, 0, 0], sizes = [4, 16, 8], strides = [1, 1, 1]} : vector<12x16x8xf32> to vector<4x16x8xf32>
    %22 = vector.extract_strided_slice %19 {offsets = [8, 0, 0], sizes = [4, 16, 8], strides = [1, 1, 1]} : vector<12x16x8xf32> to vector<4x16x8xf32>
    %cst_8 = arith.constant dense<0.000000e+00> : vector<4x16x16xf32>
    %23 = tpu.matmul %20, %21, %cst_8 {dimension_numbers = #tpu.dot_dimension_numbers<[2], [2], [1], [1], [0, 0, 0, 1, 1, 1], [0], [0]>} : vector<4x16x8xf32>, vector<4x16x8xf32>, vector<4x16x16xf32> -> vector<4x16x16xf32>
    %c0_9 = arith.constant 0 : index
    %c0_10 = arith.constant 0 : index
    %24 = vector.load %arg4[%c0_9, %c0_10] : memref<16x16xf32, #tpu.memory_space<vmem>>, vector<16x16xf32>
    %25 = vector.shape_cast %24 : vector<16x16xf32> to vector<1x16x16xf32>
    %26 = vector.broadcast %25 : vector<1x16x16xf32> to vector<4x16x16xf32>
    %27 = arith.addf %23, %26 : vector<4x16x16xf32>
    %cst_11 = arith.constant dense<0xFF800000> : vector<4x16xf32>
    %28 = vector.multi_reduction <maximumf>, %27, %cst_11 [2] : vector<4x16x16xf32> to vector<4x16xf32>
    %29 = vector.shape_cast %28 : vector<4x16xf32> to vector<4x16x1xf32>
    %30 = vector.broadcast %29 : vector<4x16x1xf32> to vector<4x16x16xf32>
    %31 = arith.subf %27, %30 : vector<4x16x16xf32>
    %32 = math.exp %31 : vector<4x16x16xf32>
    %cst_12 = arith.constant dense<0.000000e+00> : vector<4x16xf32>
    %33 = vector.multi_reduction <add>, %32, %cst_12 [2] : vector<4x16x16xf32> to vector<4x16xf32>
    %34 = vector.shape_cast %33 : vector<4x16xf32> to vector<4x16x1xf32>
    %35 = tpu.reciprocal %34 {approx = true} : vector<4x16x1xf32> -> vector<4x16x1xf32>
    %36 = arith.mulf %34, %35 : vector<4x16x1xf32>
    %cst_13 = arith.constant 2.000000e+00 : f32
    %37 = vector.broadcast %cst_13 : f32 to vector<4x16x1xf32>
    %38 = arith.subf %37, %36 : vector<4x16x1xf32>
    %39 = arith.mulf %35, %38 : vector<4x16x1xf32>
    %40 = vector.broadcast %39 : vector<4x16x1xf32> to vector<4x16x16xf32>
    %41 = arith.mulf %32, %40 : vector<4x16x16xf32>
    %cst_14 = arith.constant dense<0.000000e+00> : vector<4x16x8xf32>
    %42 = tpu.matmul %41, %22, %cst_14 {dimension_numbers = #tpu.dot_dimension_numbers<[2], [1], [1], [2], [0, 0, 0, 1, 1, 2], [0], [0]>} : vector<4x16x16xf32>, vector<4x16x8xf32>, vector<4x16x8xf32> -> vector<4x16x8xf32>
    %cst_15 = arith.constant dense<0.000000e+00> : vector<4x16x32xf32>
    %43 = tpu.matmul %42, %13, %cst_15 {dimension_numbers = #tpu.dot_dimension_numbers<[2], [1], [1], [2], [0, 0, 0, 1, 1, 2], [0], [0]>} : vector<4x16x8xf32>, vector<4x8x32xf32>, vector<4x16x32xf32> -> vector<4x16x32xf32>
    %c0_16 = arith.constant 0 : index
    %c0_17 = arith.constant 0 : index
    %c0_18 = arith.constant 0 : index
    %44 = vector.load %arg3[%c0_16, %c0_17, %c0_18] : memref<2x34x64xf32, #tpu.memory_space<vmem>>, vector<2x34x64xf32>
    %45 = vector.extract_strided_slice %44 {offsets = [1, 33, 0], sizes = [1, 1, 32], strides = [1, 1, 1]} : vector<2x34x64xf32> to vector<1x1x32xf32>
    %46 = vector.shape_cast %45 : vector<1x1x32xf32> to vector<1x32xf32>
    %cst_19 = arith.constant dense<0.000000e+00> : vector<16x32xf32>
    %47 = vector.multi_reduction <add>, %43, %cst_19 [0] : vector<4x16x32xf32> to vector<16x32xf32>
    %48 = arith.addf %0, %47 : vector<16x32xf32>
    %49 = vector.broadcast %46 : vector<1x32xf32> to vector<16x32xf32>
    %50 = arith.addf %48, %49 : vector<16x32xf32>
    %51 = arith.mulf %50, %50 : vector<16x32xf32>
    %cst_20 = arith.constant dense<0.000000e+00> : vector<16xf32>
    %52 = vector.multi_reduction <add>, %51, %cst_20 [1] : vector<16x32xf32> to vector<16xf32>
    %53 = vector.shape_cast %52 : vector<16xf32> to vector<16x1xf32>
    %cst_21 = arith.constant 3.200000e+01 : f32
    %54 = vector.broadcast %cst_21 : f32 to vector<16x1xf32>
    %55 = arith.divf %53, %54 : vector<16x1xf32>
    %cst_22 = arith.constant 9.99999996E-13 : f32
    %56 = vector.broadcast %cst_22 : f32 to vector<16x1xf32>
    %57 = arith.addf %55, %56 : vector<16x1xf32>
    %58 = math.rsqrt %57 : vector<16x1xf32>
    %59 = vector.broadcast %58 : vector<16x1xf32> to vector<16x32xf32>
    %60 = arith.mulf %50, %59 : vector<16x32xf32>
    %61 = vector.extract_strided_slice %44 {offsets = [0, 0, 0], sizes = [1, 32, 64], strides = [1, 1, 1]} : vector<2x34x64xf32> to vector<1x32x64xf32>
    %62 = vector.shape_cast %61 : vector<1x32x64xf32> to vector<32x64xf32>
    %63 = vector.extract_strided_slice %44 {offsets = [0, 32, 0], sizes = [1, 1, 64], strides = [1, 1, 1]} : vector<2x34x64xf32> to vector<1x1x64xf32>
    %64 = vector.shape_cast %63 : vector<1x1x64xf32> to vector<1x64xf32>
    %65 = vector.extract_strided_slice %44 {offsets = [1, 0, 0], sizes = [1, 32, 64], strides = [1, 1, 1]} : vector<2x34x64xf32> to vector<1x32x64xf32>
    %66 = vector.shape_cast %65 : vector<1x32x64xf32> to vector<32x64xf32>
    %67 = vector.extract_strided_slice %44 {offsets = [1, 32, 0], sizes = [1, 1, 32], strides = [1, 1, 1]} : vector<2x34x64xf32> to vector<1x1x32xf32>
    %68 = vector.shape_cast %67 : vector<1x1x32xf32> to vector<1x32xf32>
    %cst_23 = arith.constant dense<0.000000e+00> : vector<16x64xf32>
    %69 = tpu.matmul %60, %62, %cst_23 {dimension_numbers = #tpu.dot_dimension_numbers<[1], [0], [0], [1], [0, 0, 1, 1], [], []>} : vector<16x32xf32>, vector<32x64xf32>, vector<16x64xf32> -> vector<16x64xf32>
    %70 = vector.broadcast %64 : vector<1x64xf32> to vector<16x64xf32>
    %71 = arith.addf %69, %70 : vector<16x64xf32>
    %72 = arith.mulf %71, %71 : vector<16x64xf32>
    %73 = arith.mulf %71, %72 : vector<16x64xf32>
    %cst_24 = arith.constant 4.471500e-02 : f32
    %74 = vector.broadcast %cst_24 : f32 to vector<16x64xf32>
    %75 = arith.mulf %74, %73 : vector<16x64xf32>
    %76 = arith.addf %71, %75 : vector<16x64xf32>
    %cst_25 = arith.constant 0.797884583 : f32
    %77 = vector.broadcast %cst_25 : f32 to vector<16x64xf32>
    %78 = arith.mulf %77, %76 : vector<16x64xf32>
    %79 = math.tanh %78 : vector<16x64xf32>
    %cst_26 = arith.constant 1.000000e+00 : f32
    %80 = vector.broadcast %cst_26 : f32 to vector<16x64xf32>
    %81 = arith.addf %80, %79 : vector<16x64xf32>
    %cst_27 = arith.constant 5.000000e-01 : f32
    %82 = vector.broadcast %cst_27 : f32 to vector<16x64xf32>
    %83 = arith.mulf %82, %81 : vector<16x64xf32>
    %84 = arith.mulf %71, %83 : vector<16x64xf32>
    %cst_28 = arith.constant dense<0.000000e+00> : vector<16x32xf32>
    %85 = tpu.matmul %84, %66, %cst_28 {dimension_numbers = #tpu.dot_dimension_numbers<[1], [1], [0], [0], [0, 0, 1, 0], [], []>} : vector<16x64xf32>, vector<32x64xf32>, vector<16x32xf32> -> vector<16x32xf32>
    %86 = vector.broadcast %68 : vector<1x32xf32> to vector<16x32xf32>
    %87 = arith.addf %85, %86 : vector<16x32xf32>
    %88 = arith.addf %50, %87 : vector<16x32xf32>
    %c0_29 = arith.constant 0 : index
    %c0_30 = arith.constant 0 : index
    %89 = vector.load %arg5[%c0_29, %c0_30] : memref<16x32xf32, #tpu.memory_space<vmem>>, vector<16x32xf32>
    tpu.vector_store %arg5[%c0_29, %c0_30], %88 {strides = array<i32>} : memref<16x32xf32, #tpu.memory_space<vmem>>, vector<16x32xf32>,
    return
  }
  func.func @transform_0(%arg0: i32) -> (i32, i32) {
    %c0_i32 = arith.constant 0 : i32
    %c0_i32_0 = arith.constant 0 : i32
    %c0_i32_1 = arith.constant 0 : i32
    return %c0_i32, %c0_i32_0 : i32, i32
  }
  func.func @transform_1(%arg0: i32) -> (i32, i32, i32) {
    %c0_i32 = arith.constant 0 : i32
    %c0_i32_0 = arith.constant 0 : i32
    %c0_i32_1 = arith.constant 0 : i32
    %c0_i32_2 = arith.constant 0 : i32
    return %c0_i32, %c0_i32_0, %c0_i32_1 : i32, i32, i32
  }
  func.func @transform_2(%arg0: i32) -> (i32, i32, i32) {
    %c0_i32 = arith.constant 0 : i32
    %c0_i32_0 = arith.constant 0 : i32
    %c0_i32_1 = arith.constant 0 : i32
    %c0_i32_2 = arith.constant 0 : i32
    return %c0_i32, %c0_i32_0, %c0_i32_1 : i32, i32, i32
  }
  func.func @transform_3(%arg0: i32) -> (i32, i32) {
    %c0_i32 = arith.constant 0 : i32
    %c0_i32_0 = arith.constant 0 : i32
    %c0_i32_1 = arith.constant 0 : i32
    return %c0_i32, %c0_i32_0 : i32, i32
  }
  func.func @transform_4(%arg0: i32) -> (i32, i32) {
    %c0_i32 = arith.constant 0 : i32
    %c0_i32_0 = arith.constant 0 : i32
    %c0_i32_1 = arith.constant 0 : i32
    return %c0_i32, %c0_i32_0 : i32, i32
  }
}

</mosaic_0001>

<llo_original>
// kernel: decoder_layer.1
$region0: #{decoder_layer.1}
  #allocation0 [shape = 'u32[]', space=smem, size = 0x4, offset = 0x4, fixed_abs, tag = 'smem constant byte address 0x4 - core index']
  #allocation1 [shape = 'u32[144,128]{1,0:T(1,128)}', space=vmem, size = 0x12000, scoped, tag = 'internal scratch']
  %s0 = inlined_call_operand.vmem [shape: f32[16,32], index: 0, kind: input, shape index: {}, may-alias: {0,4}]
  %s1 = inlined_call_operand.vmem [shape: f32[16,8,33], index: 1, kind: input, shape index: {}]
  %s2 = inlined_call_operand.vmem [shape: f32[2,34,64], index: 2, kind: input, shape index: {}]
  %s3 = inlined_call_operand.vmem [shape: f32[16,16], index: 3, kind: input, shape index: {}]
  %s4 = inlined_call_operand.vmem [shape: f32[16,32], index: 4, kind: output, shape index: {}, may-alias: {0,4}]
  %s5 = sld [smem:[#allocation0]]
  $region26: #{decoder_layer.1} parent=0
    _
  %s7 = ssub.s32 1, %s5
  %s8 = scalar_select 0, %s7, %s5
  // Predicated region
  $region2: #{decoder_layer.1} parent=0 // pred_check
    _
  $region3: #{decoder_layer.1} parent=0 // pred_check_branch
    %10 = sbr.rel (0) target = $region5
  $region4: #{decoder_layer.1} parent=0 // pred_region
    _
  $region5: #{decoder_layer.1} parent=0 // pred_fallthru
    _
  // Predicated region
  $region6: #{decoder_layer.1} parent=0 // pred_check
    _
  $region7: #{decoder_layer.1} parent=0 // pred_check_branch
    %12 = sbr.rel (0) target = $region9
  $region8: #{decoder_layer.1} parent=0 // pred_region
    _
  $region9: #{decoder_layer.1} parent=0 // pred_fallthru
    _
  // Predicated region
  $region10: #{decoder_layer.1} parent=0 // pred_check
    _
  $region11: #{decoder_layer.1} parent=0 // pred_check_branch
    %14 = sbr.rel (0) target = $region13
  $region12: #{decoder_layer.1} parent=0 // pred_region
    _
  $region13: #{decoder_layer.1} parent=0 // pred_fallthru
    _
  // Predicated region
  $region14: #{decoder_layer.1} parent=0 // pred_check
    _
  $region15: #{decoder_layer.1} parent=0 // pred_check_branch
    %16 = sbr.rel (0) target = $region17
  $region16: #{decoder_layer.1} parent=0 // pred_region
    _
  $region17: #{decoder_layer.1} parent=0 // pred_fallthru
    _
  %v17 = vld [vmem:[%s0] sm:$0xff]
  %v18 = vld [vmem:[%s0 + $0x8] sm:$0xff]
  %v19 = vmul.f32 %v17, %v17
  %v20 = vmul.f32 %v18, %v18
  %vm21 = vcmask 261120
  %v22 = vsel %vm21, %v19, 0.0
  %23 = vadd.xlane.f32.xlu0 %v22
  %v24 = vpop.xlane.xlu0 %23
  %v25 = vsel %vm21, %v20, 0.0
  %26 = vadd.xlane.f32.xlu0 %v25
  %v27 = vpop.xlane.xlu0 %26
  %v28 = vrcp.pop 32.0
  %v29 = vmul.f32 %v24, %v28
  %v30 = vmul.f32 %v27, %v28
  %v31 = vadd.f32 %v29, 1e-12
  %v32 = vadd.f32 %v30, 1e-12
  %v33 = vrsqrt.pop %v31
  %v34 = vrsqrt.pop %v32
  %v35 = vmul.f32 %v17, %v33
  %v36 = vmul.f32 %v18, %v34
  %v37 = vld [vmem:[%s1] sm:$0xff]
  %v38 = vld [vmem:[%s1 + $0x8] sm:$0xff]
  %v39 = vld [vmem:[%s1 + $0x10] sm:$0xff]
  %v40 = vld [vmem:[%s1 + $0x18] sm:$0xff]
  %v41 = vld [vmem:[%s1 + $0x20] sm:$0xff]
  %v42 = vld [vmem:[%s1 + $0x28] sm:$0xff]
  %v43 = vld [vmem:[%s1 + $0x30] sm:$0xff]
  %v44 = vld [vmem:[%s1 + $0x38] sm:$0xff]
  %v45 = vld [vmem:[%s1 + $0x40] sm:$0xff]
  %v46 = vld [vmem:[%s1 + $0x48] sm:$0xff]
  %v47 = vld [vmem:[%s1 + $0x50] sm:$0xff]
  %v48 = vld [vmem:[%s1 + $0x58] sm:$0xff]
  %v49 = vld [vmem:[%s1 + $0x60] sm:$0xff]
  %v50 = vld [vmem:[%s1 + $0x68] sm:$0xff]
  %v51 = vld [vmem:[%s1 + $0x70] sm:$0xff]
  %v52 = vld [vmem:[%s1 + $0x78] sm:$0xff]
  %v53 = vsel %vm21, %v35, 1.0
  %v54 = vsel %vm21, %v36, 1.0
  %vm55 = vcmask 269312
  %v57 = vsel %vm55, %v53, 0
  %v60 = vsel %vm55, %v54, 0
  %v63 = vsel %vm55, %v37, 0
  %65 = vmatprep.subr.mxu0 0.0
  %66 = vmatpush1.xpose.msra.mxu0 %v63
  %67 = vmatprep.subr.mxu0 0.0
  %68 = vmatpush1.xpose.msra.mxu0 0.0
  %69 = vmatprep.subr.mxu0 0.0
  %70 = vmatpush1.xpose.msra.mxu0 0.0
  %71 = vmatprep.subr.mxu0 0.0
  %72 = vmatpush1.xpose.msra.mxu0 0.0
  %73 = vmatprep.subr.mxu0 0.0
  %74 = vmatpush1.xpose.msra.mxu0 0.0
  %75 = vmatprep.subr.mxu0 0.0
  %76 = vmatpush1.xpose.msra.mxu0 0.0
  %77 = vmatprep.subr.mxu0 0.0
  %78 = vmatpush1.xpose.msra.mxu0 0.0
  %79 = vmatprep.subr.mxu0 0.0
  %80 = vmatpush1.xpose.msra.mxu0 0.0
  %81 = vmatprep.subr.mxu0 0.0
  %82 = vmatpush1.xpose.msra.mxu0 0.0
  %83 = vmatprep.subr.mxu0 0.0
  %84 = vmatpush1.xpose.msra.mxu0 0.0
  %85 = vmatprep.subr.mxu0 0.0
  %86 = vmatpush1.xpose.msra.mxu0 0.0
  %87 = vmatprep.subr.mxu0 0.0
  %88 = vmatpush1.xpose.msra.mxu0 0.0
  %89 = vmatprep.subr.mxu0 0.0
  %90 = vmatpush1.xpose.msra.mxu0 0.0
  %91 = vmatprep.subr.mxu0 0.0
  %92 = vmatpush1.xpose.msra.mxu0 0.0
  %93 = vmatprep.subr.mxu0 0.0
  %94 = vmatpush1.xpose.msra.mxu0 0.0
  %95 = vmatprep.subr.mxu0 0.0
  %96 = vmatpush1.xpose.msra.mxu0 0.0
  %97 = vmatprep.subr.mxu0 0.0
  %98 = vmatpush1.xpose.msra.mxu0 0.0
  %99 = vmatprep.subr.mxu0 0.0
  %100 = vmatpush1.xpose.msra.mxu0 0.0
  %101 = vmatprep.subr.mxu0 0.0
  %102 = vmatpush1.xpose.msra.mxu0 0.0
  %103 = vmatprep.subr.mxu0 0.0
  %104 = vmatpush1.xpose.msra.mxu0 0.0
  %105 = vmatprep.subr.mxu0 0.0
  %106 = vmatpush1.xpose.msra.mxu0 0.0
  %107 = vmatprep.subr.mxu0 0.0
  %108 = vmatpush1.xpose.msra.mxu0 0.0
  %109 = vmatprep.subr.mxu0 0.0
  %110 = vmatpush1.xpose.msra.mxu0 0.0
  %111 = vmatprep.subr.mxu0 0.0
  %112 = vmatpush1.xpose.msra.mxu0 0.0
  %113 = vmatprep.subr.mxu0 0.0
  %114 = vmatpush1.xpose.msra.mxu0 0.0
  %115 = vmatprep.subr.mxu0 0.0
  %116 = vmatpush1.xpose.msra.mxu0 0.0
  %117 = vmatprep.subr.mxu0 0.0
  %118 = vmatpush1.xpose.msra.mxu0 0.0
  %119 = vmatprep.subr.mxu0 0.0
  %120 = vmatpush1.xpose.msra.mxu0 0.0
  %121 = vmatprep.subr.mxu0 0.0
  %122 = vmatpush1.xpose.msra.mxu0 0.0
  %123 = vmatprep.subr.mxu0 0.0
  %124 = vmatpush1.xpose.msra.mxu0 0.0
  %125 = vmatprep.subr.mxu0 0.0
  %126 = vmatpush1.xpose.msra.mxu0 0.0
  %127 = vmatprep.subr.mxu0 0.0
  %128 = vmatpush1.xpose.msra.mxu0 0.0
  %129 = vmatprep.mubr.f32.mxu0 0.0
  %130 = vmatmul.mubr.f32.gmra.mrb[0].mxu0 %v57
  %v131 = vpop.f32.mrb[0].mxu0
  %v132 = vadd.f32 0.0, %v131
  %v133 = vpop.f32.mrb[0].mxu0
  %134 = vmatprep.mubr.f32.mxu0 0.0
  %135 = vmatmul.mubr.f32.gmra.mrb[0].mxu0 %v60
  %v136 = vpop.f32.mrb[0].mxu0
  %v137 = vadd.f32 0.0, %v136
  %v138 = vpop.f32.mrb[0].mxu0
  %139 = vdwg.mxu0
  %v141 = vsel %vm55, %v38, 0
  %143 = vmatprep.subr.mxu0 0.0
  %144 = vmatpush1.xpose.msra.mxu0 %v141
  %145 = vmatprep.subr.mxu0 0.0
  %146 = vmatpush1.xpose.msra.mxu0 0.0
  %147 = vmatprep.subr.mxu0 0.0
  %148 = vmatpush1.xpose.msra.mxu0 0.0
  %149 = vmatprep.subr.mxu0 0.0
  %150 = vmatpush1.xpose.msra.mxu0 0.0
  %151 = vmatprep.subr.mxu0 0.0
  %152 = vmatpush1.xpose.msra.mxu0 0.0
  %153 = vmatprep.subr.mxu0 0.0
  %154 = vmatpush1.xpose.msra.mxu0 0.0
  %155 = vmatprep.subr.mxu0 0.0
  %156 = vmatpush1.xpose.msra.mxu0 0.0
  %157 = vmatprep.subr.mxu0 0.0
  %158 = vmatpush1.xpose.msra.mxu0 0.0
  %159 = vmatprep.subr.mxu0 0.0
  %160 = vmatpush1.xpose.msra.mxu0 0.0
  %161 = vmatprep.subr.mxu0 0.0
  %162 = vmatpush1.xpose.msra.mxu0 0.0
  %163 = vmatprep.subr.mxu0 0.0
  %164 = vmatpush1.xpose.msra.mxu0 0.0
  %165 = vmatprep.subr.mxu0 0.0
  %166 = vmatpush1.xpose.msra.mxu0 0.0
  %167 = vmatprep.subr.mxu0 0.0
  %168 = vmatpush1.xpose.msra.mxu0 0.0
  %169 = vmatprep.subr.mxu0 0.0
  %170 = vmatpush1.xpose.msra.mxu0 0.0
  %171 = vmatprep.subr.mxu0 0.0
  %172 = vmatpush1.xpose.msra.mxu0 0.0
  %173 = vmatprep.subr.mxu0 0.0
  %174 = vmatpush1.xpose.msra.mxu0 0.0
  %175 = vmatprep.subr.mxu0 0.0
  %176 = vmatpush1.xpose.msra.mxu0 0.0
  %177 = vmatprep.subr.mxu0 0.0
  %178 = vmatpush1.xpose.msra.mxu0 0.0
  %179 = vmatprep.subr.mxu0 0.0
  %180 = vmatpush1.xpose.msra.mxu0 0.0
  %181 = vmatprep.subr.mxu0 0.0
  %182 = vmatpush1.xpose.msra.mxu0 0.0
  %183 = vmatprep.subr.mxu0 0.0
  %184 = vmatpush1.xpose.msra.mxu0 0.0
  %185 = vmatprep.subr.mxu0 0.0
  %186 = vmatpush1.xpose.msra.mxu0 0.0
  %187 = vmatprep.subr.mxu0 0.0
  %188 = vmatpush1.xpose.msra.mxu0 0.0
  %189 = vmatprep.subr.mxu0 0.0
  %190 = vmatpush1.xpose.msra.mxu0 0.0
  %191 = vmatprep.subr.mxu0 0.0
  %192 = vmatpush1.xpose.msra.mxu0 0.0
  %193 = vmatprep.subr.mxu0 0.0
  %194 = vmatpush1.xpose.msra.mxu0 0.0
  %195 = vmatprep.subr.mxu0 0.0
  %196 = vmatpush1.xpose.msra.mxu0 0.0
  %197 = vmatprep.subr.mxu0 0.0
  %198 = vmatpush1.xpose.msra.mxu0 0.0
  %199 = vmatprep.subr.mxu0 0.0
  %200 = vmatpush1.xpose.msra.mxu0 0.0
  %201 = vmatprep.subr.mxu0 0.0
  %202 = vmatpush1.xpose.msra.mxu0 0.0
  %203 = vmatprep.subr.mxu0 0.0
  %204 = vmatpush1.xpose.msra.mxu0 0.0
  %205 = vmatprep.subr.mxu0 0.0
  %206 = vmatpush1.xpose.msra.mxu0 0.0
  %207 = vmatprep.mubr.f32.mxu0 0.0
  %208 = vmatmul.mubr.f32.gmra.mrb[0].mxu0 %v57
  %v209 = vpop.f32.mrb[0].mxu0
  %v210 = vadd.f32 0.0, %v209
  %v211 = vpop.f32.mrb[0].mxu0
  %212 = vmatprep.mubr.f32.mxu0 0.0
  %213 = vmatmul.mubr.f32.gmra.mrb[0].mxu0 %v60
  %v214 = vpop.f32.mrb[0].mxu0
  %v215 = vadd.f32 0.0, %v214
  %v216 = vpop.f32.mrb[0].mxu0
  %217 = vdwg.mxu0
  %v219 = vsel %vm55, %v39, 0
  %221 = vmatprep.subr.mxu0 0.0
  %222 = vmatpush1.xpose.msra.mxu0 %v219
  %223 = vmatprep.subr.mxu0 0.0
  %224 = vmatpush1.xpose.msra.mxu0 0.0
  %225 = vmatprep.subr.mxu0 0.0
  %226 = vmatpush1.xpose.msra.mxu0 0.0
  %227 = vmatprep.subr.mxu0 0.0
  %228 = vmatpush1.xpose.msra.mxu0 0.0
  %229 = vmatprep.subr.mxu0 0.0
  %230 = vmatpush1.xpose.msra.mxu0 0.0
  %231 = vmatprep.subr.mxu0 0.0
  %232 = vmatpush1.xpose.msra.mxu0 0.0
  %233 = vmatprep.subr.mxu0 0.0
  %234 = vmatpush1.xpose.msra.mxu0 0.0
  %235 = vmatprep.subr.mxu0 0.0
  %236 = vmatpush1.xpose.msra.mxu0 0.0
  %237 = vmatprep.subr.mxu0 0.0
  %238 = vmatpush1.xpose.msra.mxu0 0.0
  %239 = vmatprep.subr.mxu0 0.0
  %240 = vmatpush1.xpose.msra.mxu0 0.0
  %241 = vmatprep.subr.mxu0 0.0
  %242 = vmatpush1.xpose.msra.mxu0 0.0
  %243 = vmatprep.subr.mxu0 0.0
  %244 = vmatpush1.xpose.msra.mxu0 0.0
  %245 = vmatprep.subr.mxu0 0.0
  %246 = vmatpush1.xpose.msra.mxu0 0.0
  %247 = vmatprep.subr.mxu0 0.0
  %248 = vmatpush1.xpose.msra.mxu0 0.0
  %249 = vmatprep.subr.mxu0 0.0
  %250 = vmatpush1.xpose.msra.mxu0 0.0
  %251 = vmatprep.subr.mxu0 0.0
  %252 = vmatpush1.xpose.msra.mxu0 0.0
  %253 = vmatprep.subr.mxu0 0.0
  %254 = vmatpush1.xpose.msra.mxu0 0.0
  %255 = vmatprep.subr.mxu0 0.0
  %256 = vmatpush1.xpose.msra.mxu0 0.0
  %257 = vmatprep.subr.mxu0 0.0
  %258 = vmatpush1.xpose.msra.mxu0 0.0
  %259 = vmatprep.subr.mxu0 0.0
  %260 = vmatpush1.xpose.msra.mxu0 0.0
  %261 = vmatprep.subr.mxu0 0.0
  %262 = vmatpush1.xpose.msra.mxu0 0.0
  %263 = vmatprep.subr.mxu0 0.0
  %264 = vmatpush1.xpose.msra.mxu0 0.0
  %265 = vmatprep.subr.mxu0 0.0
  %266 = vmatpush1.xpose.msra.mxu0 0.0
  %267 = vmatprep.subr.mxu0 0.0
  %268 = vmatpush1.xpose.msra.mxu0 0.0
  %269 = vmatprep.subr.mxu0 0.0
  %270 = vmatpush1.xpose.msra.mxu0 0.0
  %271 = vmatprep.subr.mxu0 0.0
  %272 = vmatpush1.xpose.msra.mxu0 0.0
  %273 = vmatprep.subr.mxu0 0.0
  %274 = vmatpush1.xpose.msra.mxu0 0.0
  %275 = vmatprep.subr.mxu0 0.0
  %276 = vmatpush1.xpose.msra.mxu0 0.0
  %277 = vmatprep.subr.mxu0 0.0
  %278 = vmatpush1.xpose.msra.mxu0 0.0
  %279 = vmatprep.subr.mxu0 0.0
  %280 = vmatpush1.xpose.msra.mxu0 0.0
  %281 = vmatprep.subr.mxu0 0.0
  %282 = vmatpush1.xpose.msra.mxu0 0.0
  %283 = vmatprep.subr.mxu0 0.0
  %284 = vmatpush1.xpose.msra.mxu0 0.0
  %285 = vmatprep.mubr.f32.mxu0 0.0
  %286 = vmatmul.mubr.f32.gmra.mrb[0].mxu0 %v57
  %v287 = vpop.f32.mrb[0].mxu0
  %v288 = vadd.f32 0.0, %v287
  %v289 = vpop.f32.mrb[0].mxu0
  %290 = vmatprep.mubr.f32.mxu0 0.0
  %291 = vmatmul.mubr.f32.gmra.mrb[0].mxu0 %v60
  %v292 = vpop.f32.mrb[0].mxu0
  %v293 = vadd.f32 0.0, %v292
  %v294 = vpop.f32.mrb[0].mxu0
  %295 = vdwg.mxu0
  %v297 = vsel %vm55, %v40, 0
  %299 = vmatprep.subr.mxu0 0.0
  %300 = vmatpush1.xpose.msra.mxu0 %v297
  %301 = vmatprep.subr.mxu0 0.0
  %302 = vmatpush1.xpose.msra.mxu0 0.0
  %303 = vmatprep.subr.mxu0 0.0
  %304 = vmatpush1.xpose.msra.mxu0 0.0
  %305 = vmatprep.subr.mxu0 0.0
  %306 = vmatpush1.xpose.msra.mxu0 0.0
  %307 = vmatprep.subr.mxu0 0.0
  %308 = vmatpush1.xpose.msra.mxu0 0.0
  %309 = vmatprep.subr.mxu0 0.0
  %310 = vmatpush1.xpose.msra.mxu0 0.0
  %311 = vmatprep.subr.mxu0 0.0
  %312 = vmatpush1.xpose.msra.mxu0 0.0
  %313 = vmatprep.subr.mxu0 0.0
  %314 = vmatpush1.xpose.msra.mxu0 0.0
  %315 = vmatprep.subr.mxu0 0.0
  %316 = vmatpush1.xpose.msra.mxu0 0.0
  %317 = vmatprep.subr.mxu0 0.0
  %318 = vmatpush1.xpose.msra.mxu0 0.0
  %319 = vmatprep.subr.mxu0 0.0
  %320 = vmatpush1.xpose.msra.mxu0 0.0
  %321 = vmatprep.subr.mxu0 0.0
  %322 = vmatpush1.xpose.msra.mxu0 0.0
  %323 = vmatprep.subr.mxu0 0.0
  %324 = vmatpush1.xpose.msra.mxu0 0.0
  %325 = vmatprep.subr.mxu0 0.0
  %326 = vmatpush1.xpose.msra.mxu0 0.0
  %327 = vmatprep.subr.mxu0 0.0
  %328 = vmatpush1.xpose.msra.mxu0 0.0
  %329 = vmatprep.subr.mxu0 0.0
  %330 = vmatpush1.xpose.msra.mxu0 0.0
  %331 = vmatprep.subr.mxu0 0.0
  %332 = vmatpush1.xpose.msra.mxu0 0.0
  %333 = vmatprep.subr.mxu0 0.0
  %334 = vmatpush1.xpose.msra.mxu0 0.0
  %335 = vmatprep.subr.mxu0 0.0
  %336 = vmatpush1.xpose.msra.mxu0 0.0
  %337 = vmatprep.subr.mxu0 0.0
  %338 = vmatpush1.xpose.msra.mxu0 0.0
  %339 = vmatprep.subr.mxu0 0.0
  %340 = vmatpush1.xpose.msra.mxu0 0.0
  %341 = vmatprep.subr.mxu0 0.0
  %342 = vmatpush1.xpose.msra.mxu0 0.0
  %343 = vmatprep.subr.mxu0 0.0
  %344 = vmatpush1.xpose.msra.mxu0 0.0
  %345 = vmatprep.subr.mxu0 0.0
  %346 = vmatpush1.xpose.msra.mxu0 0.0
  %347 = vmatprep.subr.mxu0 0.0
  %348 = vmatpush1.xpose.msra.mxu0 0.0
  %349 = vmatprep.subr.mxu0 0.0
  %350 = vmatpush1.xpose.msra.mxu0 0.0
  %351 = vmatprep.subr.mxu0 0.0
  %352 = vmatpush1.xpose.msra.mxu0 0.0
  %353 = vmatprep.subr.mxu0 0.0
  %354 = vmatpush1.xpose.msra.mxu0 0.0
  %355 = vmatprep.subr.mxu0 0.0
  %356 = vmatpush1.xpose.msra.mxu0 0.0
  %357 = vmatprep.subr.mxu0 0.0
  %358 = vmatpush1.xpose.msra.mxu0 0.0
  %359 = vmatprep.subr.mxu0 0.0
  %360 = vmatpush1.xpose.msra.mxu0 0.0
  %361 = vmatprep.subr.mxu0 0.0
  %362 = vmatpush1.xpose.msra.mxu0 0.0
  %363 = vmatprep.mubr.f32.mxu0 0.0
  %364 = vmatmul.mubr.f32.gmra.mrb[0].mxu0 %v57
  %v365 = vpop.f32.mrb[0].mxu0
  %v366 = vadd.f32 0.0, %v365
  %v367 = vpop.f32.mrb[0].mxu0
  %368 = vmatprep.mubr.f32.mxu0 0.0
  %369 = vmatmul.mubr.f32.gmra.mrb[0].mxu0 %v60
  %v370 = vpop.f32.mrb[0].mxu0
  %v371 = vadd.f32 0.0, %v370
  %v372 = vpop.f32.mrb[0].mxu0
  %373 = vdwg.mxu0
  %v375 = vsel %vm55, %v41, 0
  %377 = vmatprep.subr.mxu0 0.0
  %378 = vmatpush1.xpose.msra.mxu0 %v375
  %379 = vmatprep.subr.mxu0 0.0
  %380 = vmatpush1.xpose.msra.mxu0 0.0
  %381 = vmatprep.subr.mxu0 0.0
  %382 = vmatpush1.xpose.msra.mxu0 0.0
  %383 = vmatprep.subr.mxu0 0.0
  %384 = vmatpush1.xpose.msra.mxu0 0.0
  %385 = vmatprep.subr.mxu0 0.0
  %386 = vmatpush1.xpose.msra.mxu0 0.0
  %387 = vmatprep.subr.mxu0 0.0
  %388 = vmatpush1.xpose.msra.mxu0 0.0
  %389 = vmatprep.subr.mxu0 0.0
  %390 = vmatpush1.xpose.msra.mxu0 0.0
  %391 = vmatprep.subr.mxu0 0.0
  %392 = vmatpush1.xpose.msra.mxu0 0.0
  %393 = vmatprep.subr.mxu0 0.0
  %394 = vmatpush1.xpose.msra.mxu0 0.0
  %395 = vmatprep.subr.mxu0 0.0
  %396 = vmatpush1.xpose.msra.mxu0 0.0
  %397 = vmatprep.subr.mxu0 0.0
  %398 = vmatpush1.xpose.msra.mxu0 0.0
  %399 = vmatprep.subr.mxu0 0.0
  %400 = vmatpush1.xpose.msra.mxu0 0.0
  %401 = vmatprep.subr.mxu0 0.0
  %402 = vmatpush1.xpose.msra.mxu0 0.0
  %403 = vmatprep.subr.mxu0 0.0
  %404 = vmatpush1.xpose.msra.mxu0 0.0
  %405 = vmatprep.subr.mxu0 0.0
  %406 = vmatpush1.xpose.msra.mxu0 0.0
  %407 = vmatprep.subr.mxu0 0.0
  %408 = vmatpush1.xpose.msra.mxu0 0.0
  %409 = vmatprep.subr.mxu0 0.0
  %410 = vmatpush1.xpose.msra.mxu0 0.0
  %411 = vmatprep.subr.mxu0 0.0
  %412 = vmatpush1.xpose.msra.mxu0 0.0
  %413 = vmatprep.subr.mxu0 0.0
  %414 = vmatpush1.xpose.msra.mxu0 0.0
  %415 = vmatprep.subr.mxu0 0.0
  %416 = vmatpush1.xpose.msra.mxu0 0.0
  %417 = vmatprep.subr.mxu0 0.0
  %418 = vmatpush1.xpose.msra.mxu0 0.0
  %419 = vmatprep.subr.mxu0 0.0
  %420 = vmatpush1.xpose.msra.mxu0 0.0
  %421 = vmatprep.subr.mxu0 0.0
  %422 = vmatpush1.xpose.msra.mxu0 0.0
  %423 = vmatprep.subr.mxu0 0.0
  %424 = vmatpush1.xpose.msra.mxu0 0.0
  %425 = vmatprep.subr.mxu0 0.0
  %426 = vmatpush1.xpose.msra.mxu0 0.0
  %427 = vmatprep.subr.mxu0 0.0
  %428 = vmatpush1.xpose.msra.mxu0 0.0
  %429 = vmatprep.subr.mxu0 0.0
  %430 = vmatpush1.xpose.msra.mxu0 0.0
  %431 = vmatprep.subr.mxu0 0.0
  %432 = vmatpush1.xpose.msra.mxu0 0.0
  %433 = vmatprep.subr.mxu0 0.0
  %434 = vmatpush1.xpose.msra.mxu0 0.0
  %435 = vmatprep.subr.mxu0 0.0
  %436 = vmatpush1.xpose.msra.mxu0 0.0
  %437 = vmatprep.subr.mxu0 0.0
  %438 = vmatpush1.xpose.msra.mxu0 0.0
  %439 = vmatprep.subr.mxu0 0.0
  %440 = vmatpush1.xpose.msra.mxu0 0.0
  %441 = vmatprep.mubr.f32.mxu0 0.0
  %442 = vmatmul.mubr.f32.gmra.mrb[0].mxu0 %v57
  %v443 = vpop.f32.mrb[0].mxu0
  %v444 = vadd.f32 0.0, %v443
  %v445 = vpop.f32.mrb[0].mxu0
  %446 = vmatprep.mubr.f32.mxu0 0.0
  %447 = vmatmul.mubr.f32.gmra.mrb[0].mxu0 %v60
  %v448 = vpop.f32.mrb[0].mxu0
  %v449 = vadd.f32 0.0, %v448
  %v450 = vpop.f32.mrb[0].mxu0
  %451 = vdwg.mxu0
  %v453 = vsel %vm55, %v42, 0
  %455 = vmatprep.subr.mxu0 0.0
  %456 = vmatpush1.xpose.msra.mxu0 %v453
  %457 = vmatprep.subr.mxu0 0.0
  %458 = vmatpush1.xpose.msra.mxu0 0.0
  %459 = vmatprep.subr.mxu0 0.0
  %460 = vmatpush1.xpose.msra.mxu0 0.0
  %461 = vmatprep.subr.mxu0 0.0
  %462 = vmatpush1.xpose.msra.mxu0 0.0
  %463 = vmatprep.subr.mxu0 0.0
  %464 = vmatpush1.xpose.msra.mxu0 0.0
  %465 = vmatprep.subr.mxu0 0.0
  %466 = vmatpush1.xpose.msra.mxu0 0.0
  %467 = vmatprep.subr.mxu0 0.0
  %468 = vmatpush1.xpose.msra.mxu0 0.0
  %469 = vmatprep.subr.mxu0 0.0
  %470 = vmatpush1.xpose.msra.mxu0 0.0
  %471 = vmatprep.subr.mxu0 0.0
  %472 = vmatpush1.xpose.msra.mxu0 0.0
  %473 = vmatprep.subr.mxu0 0.0
  %474 = vmatpush1.xpose.msra.mxu0 0.0
  %475 = vmatprep.subr.mxu0 0.0
  %476 = vmatpush1.xpose.msra.mxu0 0.0
  %477 = vmatprep.subr.mxu0 0.0
  %478 = vmatpush1.xpose.msra.mxu0 0.0
  %479 = vmatprep.subr.mxu0 0.0
  %480 = vmatpush1.xpose.msra.mxu0 0.0
  %481 = vmatprep.subr.mxu0 0.0
  %482 = vmatpush1.xpose.msra.mxu0 0.0
  %483 = vmatprep.subr.mxu0 0.0
  %484 = vmatpush1.xpose.msra.mxu0 0.0
  %485 = vmatprep.subr.mxu0 0.0
  %486 = vmatpush1.xpose.msra.mxu0 0.0
  %487 = vmatprep.subr.mxu0 0.0
  %488 = vmatpush1.xpose.msra.mxu0 0.0
  %489 = vmatprep.subr.mxu0 0.0
  %490 = vmatpush1.xpose.msra.mxu0 0.0
  %491 = vmatprep.subr.mxu0 0.0
  %492 = vmatpush1.xpose.msra.mxu0 0.0
  %493 = vmatprep.subr.mxu0 0.0
  %494 = vmatpush1.xpose.msra.mxu0 0.0
  %495 = vmatprep.subr.mxu0 0.0
  %496 = vmatpush1.xpose.msra.mxu0 0.0
  %497 = vmatprep.subr.mxu0 0.0
  %498 = vmatpush1.xpose.msra.mxu0 0.0
  %499 = vmatprep.subr.mxu0 0.0
  %500 = vmatpush1.xpose.msra.mxu0 0.0
  %501 = vmatprep.subr.mxu0 0.0
  %502 = vmatpush1.xpose.msra.mxu0 0.0
  %503 = vmatprep.subr.mxu0 0.0
  %504 = vmatpush1.xpose.msra.mxu0 0.0
  %505 = vmatprep.subr.mxu0 0.0
  %506 = vmatpush1.xpose.msra.mxu0 0.0
  %507 = vmatprep.subr.mxu0 0.0
  %508 = vmatpush1.xpose.msra.mxu0 0.0
  %509 = vmatprep.subr.mxu0 0.0
  %510 = vmatpush1.xpose.msra.mxu0 0.0
  %511 = vmatprep.subr.mxu0 0.0
  %512 = vmatpush1.xpose.msra.mxu0 0.0
  %513 = vmatprep.subr.mxu0 0.0
  %514 = vmatpush1.xpose.msra.mxu0 0.0
  %515 = vmatprep.subr.mxu0 0.0
  %516 = vmatpush1.xpose.msra.mxu0 0.0
  %517 = vmatprep.subr.mxu0 0.0
  %518 = vmatpush1.xpose.msra.mxu0 0.0
  %519 = vmatprep.mubr.f32.mxu0 0.0
  %520 = vmatmul.mubr.f32.gmra.mrb[0].mxu0 %v57
  %v521 = vpop.f32.mrb[0].mxu0
  %v522 = vadd.f32 0.0, %v521
  %v523 = vpop.f32.mrb[0].mxu0
  %524 = vmatprep.mubr.f32.mxu0 0.0
  %525 = vmatmul.mubr.f32.gmra.mrb[0].mxu0 %v60
  %v526 = vpop.f32.mrb[0].mxu0
  %v527 = vadd.f32 0.0, %v526
  %v528 = vpop.f32.mrb[0].mxu0
  %529 = vdwg.mxu0
  %v531 = vsel %vm55, %v43, 0
  %533 = vmatprep.subr.mxu0 0.0
  %534 = vmatpush1.xpose.msra.mxu0 %v531
  %535 = vmatprep.subr.mxu0 0.0
  %536 = vmatpush1.xpose.msra.mxu0 0.0
  %537 = vmatprep.subr.mxu0 0.0
  %538 = vmatpush1.xpose.msra.mxu0 0.0
  %539 = vmatprep.subr.mxu0 0.0
  %540 = vmatpush1.xpose.msra.mxu0 0.0
  %541 = vmatprep.subr.mxu0 0.0
  %542 = vmatpush1.xpose.msra.mxu0 0.0
  %543 = vmatprep.subr.mxu0 0.0
  %544 = vmatpush1.xpose.msra.mxu0 0.0
  %545 = vmatprep.subr.mxu0 0.0
  %546 = vmatpush1.xpose.msra.mxu0 0.0
  %547 = vmatprep.subr.mxu0 0.0
  %548 = vmatpush1.xpose.msra.mxu0 0.0
  %549 = vmatprep.subr.mxu0 0.0
  %550 = vmatpush1.xpose.msra.mxu0 0.0
  %551 = vmatprep.subr.mxu0 0.0
  %552 = vmatpush1.xpose.msra.mxu0 0.0
  %553 = vmatprep.subr.mxu0 0.0
  %554 = vmatpush1.xpose.msra.mxu0 0.0
  %555 = vmatprep.subr.mxu0 0.0
  %556 = vmatpush1.xpose.msra.mxu0 0.0
  %557 = vmatprep.subr.mxu0 0.0
  %558 = vmatpush1.xpose.msra.mxu0 0.0
  %559 = vmatprep.subr.mxu0 0.0
  %560 = vmatpush1.xpose.msra.mxu0 0.0
  %561 = vmatprep.subr.mxu0 0.0
  %562 = vmatpush1.xpose.msra.mxu0 0.0
  %563 = vmatprep.subr.mxu0 0.0
  %564 = vmatpush1.xpose.msra.mxu0 0.0
  %565 = vmatprep.subr.mxu0 0.0
  %566 = vmatpush1.xpose.msra.mxu0 0.0
  %567 = vmatprep.subr.mxu0 0.0
  %568 = vmatpush1.xpose.msra.mxu0 0.0
  %569 = vmatprep.subr.mxu0 0.0
  %570 = vmatpush1.xpose.msra.mxu0 0.0
  %571 = vmatprep.subr.mxu0 0.0
  %572 = vmatpush1.xpose.msra.mxu0 0.0
  %573 = vmatprep.subr.mxu0 0.0
  %574 = vmatpush1.xpose.msra.mxu0 0.0
  %575 = vmatprep.subr.mxu0 0.0
  %576 = vmatpush1.xpose.msra.mxu0 0.0
  %577 = vmatprep.subr.mxu0 0.0
  %578 = vmatpush1.xpose.msra.mxu0 0.0
  %579 = vmatprep.subr.mxu0 0.0
  %580 = vmatpush1.xpose.msra.mxu0 0.0
  %581 = vmatprep.subr.mxu0 0.0
  %582 = vmatpush1.xpose.msra.mxu0 0.0
  %583 = vmatprep.subr.mxu0 0.0
  %584 = vmatpush1.xpose.msra.mxu0 0.0
  %585 = vmatprep.subr.mxu0 0.0
  %586 = vmatpush1.xpose.msra.mxu0 0.0
  %587 = vmatprep.subr.mxu0 0.0
  %588 = vmatpush1.xpose.msra.mxu0 0.0
  %589 = vmatprep.subr.mxu0 0.0
  %590 = vmatpush1.xpose.msra.mxu0 0.0
  %591 = vmatprep.subr.mxu0 0.0
  %592 = vmatpush1.xpose.msra.mxu0 0.0
  %593 = vmatprep.subr.mxu0 0.0
  %594 = vmatpush1.xpose.msra.mxu0 0.0
  %595 = vmatprep.subr.mxu0 0.0
  %596 = vmatpush1.xpose.msra.mxu0 0.0
  %597 = vmatprep.mubr.f32.mxu0 0.0
  %598 = vmatmul.mubr.f32.gmra.mrb[0].mxu0 %v57
  %v599 = vpop.f32.mrb[0].mxu0
  %v600 = vadd.f32 0.0, %v599
  %v601 = vpop.f32.mrb[0].mxu0
  %602 = vmatprep.mubr.f32.mxu0 0.0
  %603 = vmatmul.mubr.f32.gmra.mrb[0].mxu0 %v60
  %v604 = vpop.f32.mrb[0].mxu0
  %v605 = vadd.f32 0.0, %v604
  %v606 = vpop.f32.mrb[0].mxu0
  %607 = vdwg.mxu0
  %v609 = vsel %vm55, %v44, 0
  %611 = vmatprep.subr.mxu0 0.0
  %612 = vmatpush1.xpose.msra.mxu0 %v609
  %613 = vmatprep.subr.mxu0 0.0
  %614 = vmatpush1.xpose.msra.mxu0 0.0
  %615 = vmatprep.subr.mxu0 0.0
  %616 = vmatpush1.xpose.msra.mxu0 0.0
  %617 = vmatprep.subr.mxu0 0.0
  %618 = vmatpush1.xpose.msra.mxu0 0.0
  %619 = vmatprep.subr.mxu0 0.0
  %620 = vmatpush1.xpose.msra.mxu0 0.0
  %621 = vmatprep.subr.mxu0 0.0
  %622 = vmatpush1.xpose.msra.mxu0 0.0
  %623 = vmatprep.subr.mxu0 0.0
  %624 = vmatpush1.xpose.msra.mxu0 0.0
  %625 = vmatprep.subr.mxu0 0.0
  %626 = vmatpush1.xpose.msra.mxu0 0.0
  %627 = vmatprep.subr.mxu0 0.0
  %628 = vmatpush1.xpose.msra.mxu0 0.0
  %629 = vmatprep.subr.mxu0 0.0
  %630 = vmatpush1.xpose.msra.mxu0 0.0
  %631 = vmatprep.subr.mxu0 0.0
  %632 = vmatpush1.xpose.msra.mxu0 0.0
  %633 = vmatprep.subr.mxu0 0.0
  %634 = vmatpush1.xpose.msra.mxu0 0.0
  %635 = vmatprep.subr.mxu0 0.0
  %636 = vmatpush1.xpose.msra.mxu0 0.0
  %637 = vmatprep.subr.mxu0 0.0
  %638 = vmatpush1.xpose.msra.mxu0 0.0
  %639 = vmatprep.subr.mxu0 0.0
  %640 = vmatpush1.xpose.msra.mxu0 0.0
  %641 = vmatprep.subr.mxu0 0.0
  %642 = vmatpush1.xpose.msra.mxu0 0.0
  %643 = vmatprep.subr.mxu0 0.0
  %644 = vmatpush1.xpose.msra.mxu0 0.0
  %645 = vmatprep.subr.mxu0 0.0
  %646 = vmatpush1.xpose.msra.mxu0 0.0
  %647 = vmatprep.subr.mxu0 0.0
  %648 = vmatpush1.xpose.msra.mxu0 0.0
  %649 = vmatprep.subr.mxu0 0.0
  %650 = vmatpush1.xpose.msra.mxu0 0.0
  %651 = vmatprep.subr.mxu0 0.0
  %652 = vmatpush1.xpose.msra.mxu0 0.0
  %653 = vmatprep.subr.mxu0 0.0
  %654 = vmatpush1.xpose.msra.mxu0 0.0
  %655 = vmatprep.subr.mxu0 0.0
  %656 = vmatpush1.xpose.msra.mxu0 0.0
  %657 = vmatprep.subr.mxu0 0.0
  %658 = vmatpush1.xpose.msra.mxu0 0.0
  %659 = vmatprep.subr.mxu0 0.0
  %660 = vmatpush1.xpose.msra.mxu0 0.0
  %661 = vmatprep.subr.mxu0 0.0
  %662 = vmatpush1.xpose.msra.mxu0 0.0
  %663 = vmatprep.subr.mxu0 0.0
  %664 = vmatpush1.xpose.msra.mxu0 0.0
  %665 = vmatprep.subr.mxu0 0.0
  %666 = vmatpush1.xpose.msra.mxu0 0.0
  %667 = vmatprep.subr.mxu0 0.0
  %668 = vmatpush1.xpose.msra.mxu0 0.0
  %669 = vmatprep.subr.mxu0 0.0
  %670 = vmatpush1.xpose.msra.mxu0 0.0
  %671 = vmatprep.subr.mxu0 0.0
  %672 = vmatpush1.xpose.msra.mxu0 0.0
  %673 = vmatprep.subr.mxu0 0.0
  %674 = vmatpush1.xpose.msra.mxu0 0.0
  %675 = vmatprep.mubr.f32.mxu0 0.0
  %676 = vmatmul.mubr.f32.gmra.mrb[0].mxu0 %v57
  %v677 = vpop.f32.mrb[0].mxu0
  %v678 = vadd.f32 0.0, %v677
  %v679 = vpop.f32.mrb[0].mxu0
  %680 = vmatprep.mubr.f32.mxu0 0.0
  %681 = vmatmul.mubr.f32.gmra.mrb[0].mxu0 %v60
  %v682 = vpop.f32.mrb[0].mxu0
  %v683 = vadd.f32 0.0, %v682
  %v684 = vpop.f32.mrb[0].mxu0
  %685 = vdwg.mxu0
  %v687 = vsel %vm55, %v45, 0
  %689 = vmatprep.subr.mxu0 0.0
  %690 = vmatpush1.xpose.msra.mxu0 %v687
  %691 = vmatprep.subr.mxu0 0.0
  %692 = vmatpush1.xpose.msra.mxu0 0.0
  %693 = vmatprep.subr.mxu0 0.0
  %694 = vmatpush1.xpose.msra.mxu0 0.0
  %695 = vmatprep.subr.mxu0 0.0
  %696 = vmatpush1.xpose.msra.mxu0 0.0
  %697 = vmatprep.subr.mxu0 0.0
  %698 = vmatpush1.xpose.msra.mxu0 0.0
  %699 = vmatprep.subr.mxu0 0.0
  %700 = vmatpush1.xpose.msra.mxu0 0.0
  %701 = vmatprep.subr.mxu0 0.0
  %702 = vmatpush1.xpose.msra.mxu0 0.0
  %703 = vmatprep.subr.mxu0 0.0
  %704 = vmatpush1.xpose.msra.mxu0 0.0
  %705 = vmatprep.subr.mxu0 0.0
  %706 = vmatpush1.xpose.msra.mxu0 0.0
  %707 = vmatprep.subr.mxu0 0.0
  %708 = vmatpush1.xpose.msra.mxu0 0.0
  %709 = vmatprep.subr.mxu0 0.0
  %710 = vmatpush1.xpose.msra.mxu0 0.0
  %711 = vmatprep.subr.mxu0 0.0
  %712 = vmatpush1.xpose.msra.mxu0 0.0
  %713 = vmatprep.subr.mxu0 0.0
  %714 = vmatpush1.xpose.msra.mxu0 0.0
  %715 = vmatprep.subr.mxu0 0.0
  %716 = vmatpush1.xpose.msra.mxu0 0.0
  %717 = vmatprep.subr.mxu0 0.0
  %718 = vmatpush1.xpose.msra.mxu0 0.0
  %719 = vmatprep.subr.mxu0 0.0
  %720 = vmatpush1.xpose.msra.mxu0 0.0
  %721 = vmatprep.subr.mxu0 0.0
  %722 = vmatpush1.xpose.msra.mxu0 0.0
  %723 = vmatprep.subr.mxu0 0.0
  %724 = vmatpush1.xpose.msra.mxu0 0.0
  %725 = vmatprep.subr.mxu0 0.0
  %726 = vmatpush1.xpose.msra.mxu0 0.0
  %727 = vmatprep.subr.mxu0 0.0
  %728 = vmatpush1.xpose.msra.mxu0 0.0
  %729 = vmatprep.subr.mxu0 0.0
  %730 = vmatpush1.xpose.msra.mxu0 0.0
  %731 = vmatprep.subr.mxu0 0.0
  %732 = vmatpush1.xpose.msra.mxu0 0.0
  %733 = vmatprep.subr.mxu0 0.0
  %734 = vmatpush1.xpose.msra.mxu0 0.0
  %735 = vmatprep.subr.mxu0 0.0
  %736 = vmatpush1.xpose.msra.mxu0 0.0
  %737 = vmatprep.subr.mxu0 0.0
  %738 = vmatpush1.xpose.msra.mxu0 0.0
  %739 = vmatprep.subr.mxu0 0.0
  %740 = vmatpush1.xpose.msra.mxu0 0.0
  %741 = vmatprep.subr.mxu0 0.0
  %742 = vmatpush1.xpose.msra.mxu0 0.0
  %743 = vmatprep.subr.mxu0 0.0
  %744 = vmatpush1.xpose.msra.mxu0 0.0
  %745 = vmatprep.subr.mxu0 0.0
  %746 = vmatpush1.xpose.msra.mxu0 0.0
  %747 = vmatprep.subr.mxu0 0.0
  %748 = vmatpush1.xpose.msra.mxu0 0.0
  %749 = vmatprep.subr.mxu0 0.0
  %750 = vmatpush1.xpose.msra.mxu0 0.0
  %751 = vmatprep.subr.mxu0 0.0
  %752 = vmatpush1.xpose.msra.mxu0 0.0
  %753 = vmatprep.mubr.f32.mxu0 0.0
  %754 = vmatmul.mubr.f32.gmra.mrb[0].mxu0 %v57
  %v755 = vpop.f32.mrb[0].mxu0
  %v756 = vadd.f32 0.0, %v755
  %v757 = vpop.f32.mrb[0].mxu0
  %758 = vmatprep.mubr.f32.mxu0 0.0
  %759 = vmatmul.mubr.f32.gmra.mrb[0].mxu0 %v60
  %v760 = vpop.f32.mrb[0].mxu0
  %v761 = vadd.f32 0.0, %v760
  %v762 = vpop.f32.mrb[0].mxu0
  %763 = vdwg.mxu0
  %v765 = vsel %vm55, %v46, 0
  %767 = vmatprep.subr.mxu0 0.0
  %768 = vmatpush1.xpose.msra.mxu0 %v765
  %769 = vmatprep.subr.mxu0 0.0
  %770 = vmatpush1.xpose.msra.mxu0 0.0
  %771 = vmatprep.subr.mxu0 0.0
  %772 = vmatpush1.xpose.msra.mxu0 0.0
  %773 = vmatprep.subr.mxu0 0.0
  %774 = vmatpush1.xpose.msra.mxu0 0.0
  %775 = vmatprep.subr.mxu0 0.0
  %776 = vmatpush1.xpose.msra.mxu0 0.0
  %777 = vmatprep.subr.mxu0 0.0
  %778 = vmatpush1.xpose.msra.mxu0 0.0
  %779 = vmatprep.subr.mxu0 0.0
  %780 = vmatpush1.xpose.msra.mxu0 0.0
  %781 = vmatprep.subr.mxu0 0.0
  %782 = vmatpush1.xpose.msra.mxu0 0.0
  %783 = vmatprep.subr.mxu0 0.0
  %784 = vmatpush1.xpose.msra.mxu0 0.0
  %785 = vmatprep.subr.mxu0 0.0
  %786 = vmatpush1.xpose.msra.mxu0 0.0
  %787 = vmatprep.subr.mxu0 0.0
  %788 = vmatpush1.xpose.msra.mxu0 0.0
  %789 = vmatprep.subr.mxu0 0.0
  %790 = vmatpush1.xpose.msra.mxu0 0.0
  %791 = vmatprep.subr.mxu0 0.0
  %792 = vmatpush1.xpose.msra.mxu0 0.0
  %793 = vmatprep.subr.mxu0 0.0
  %794 = vmatpush1.xpose.msra.mxu0 0.0
  %795 = vmatprep.subr.mxu0 0.0
  %796 = vmatpush1.xpose.msra.mxu0 0.0
  %797 = vmatprep.subr.mxu0 0.0
  %798 = vmatpush1.xpose.msra.mxu0 0.0
  %799 = vmatprep.subr.mxu0 0.0
  %800 = vmatpush1.xpose.msra.mxu0 0.0
  %801 = vmatprep.subr.mxu0 0.0
  %802 = vmatpush1.xpose.msra.mxu0 0.0
  %803 = vmatprep.subr.mxu0 0.0
  %804 = vmatpush1.xpose.msra.mxu0 0.0
  %805 = vmatprep.subr.mxu0 0.0
  %806 = vmatpush1.xpose.msra.mxu0 0.0
  %807 = vmatprep.subr.mxu0 0.0
  %808 = vmatpush1.xpose.msra.mxu0 0.0
  %809 = vmatprep.subr.mxu0 0.0
  %810 = vmatpush1.xpose.msra.mxu0 0.0
  %811 = vmatprep.subr.mxu0 0.0
  %812 = vmatpush1.xpose.msra.mxu0 0.0
  %813 = vmatprep.subr.mxu0 0.0
  %814 = vmatpush1.xpose.msra.mxu0 0.0
  %815 = vmatprep.subr.mxu0 0.0
  %816 = vmatpush1.xpose.msra.mxu0 0.0
  %817 = vmatprep.subr.mxu0 0.0
  %818 = vmatpush1.xpose.msra.mxu0 0.0
  %819 = vmatprep.subr.mxu0 0.0
  %820 = vmatpush1.xpose.msra.mxu0 0.0
  %821 = vmatprep.subr.mxu0 0.0
  %822 = vmatpush1.xpose.msra.mxu0 0.0
  %823 = vmatprep.subr.mxu0 0.0
  %824 = vmatpush1.xpose.msra.mxu0 0.0
  %825 = vmatprep.subr.mxu0 0.0
  %826 = vmatpush1.xpose.msra.mxu0 0.0
  %827 = vmatprep.subr.mxu0 0.0
  %828 = vmatpush1.xpose.msra.mxu0 0.0
  %829 = vmatprep.subr.mxu0 0.0
  %830 = vmatpush1.xpose.msra.mxu0 0.0
  %831 = vmatprep.mubr.f32.mxu0 0.0
  %832 = vmatmul.mubr.f32.gmra.mrb[0].mxu0 %v57
  %v833 = vpop.f32.mrb[0].mxu0
  %v834 = vadd.f32 0.0, %v833
  %v835 = vpop.f32.mrb[0].mxu0
  %836 = vmatprep.mubr.f32.mxu0 0.0
  %837 = vmatmul.mubr.f32.gmra.mrb[0].mxu0 %v60
  %v838 = vpop.f32.mrb[0].mxu0
  %v839 = vadd.f32 0.0, %v838
  %v840 = vpop.f32.mrb[0].mxu0
  %841 = vdwg.mxu0
  %v843 = vsel %vm55, %v47, 0
  %845 = vmatprep.subr.mxu0 0.0
  %846 = vmatpush1.xpose.msra.mxu0 %v843
  %847 = vmatprep.subr.mxu0 0.0
  %848 = vmatpush1.xpose.msra.mxu0 0.0
  %849 = vmatprep.subr.mxu0 0.0
  %850 = vmatpush1.xpose.msra.mxu0 0.0
  %851 = vmatprep.subr.mxu0 0.0
  %852 = vmatpush1.xpose.msra.mxu0 0.0
  %853 = vmatprep.subr.mxu0 0.0
  %854 = vmatpush1.xpose.msra.mxu0 0.0
  %855 = vmatprep.subr.mxu0 0.0
  %856 = vmatpush1.xpose.msra.mxu0 0.0
  %857 = vmatprep.subr.mxu0 0.0
  %858 = vmatpush1.xpose.msra.mxu0 0.0
  %859 = vmatprep.subr.mxu0 0.0
  %860 = vmatpush1.xpose.msra.mxu0 0.0
  %861 = vmatprep.subr.mxu0 0.0
  %862 = vmatpush1.xpose.msra.mxu0 0.0
  %863 = vmatprep.subr.mxu0 0.0
  %864 = vmatpush1.xpose.msra.mxu0 0.0
  %865 = vmatprep.subr.mxu0 0.0
  %866 = vmatpush1.xpose.msra.mxu0 0.0
  %867 = vmatprep.subr.mxu0 0.0
  %868 = vmatpush1.xpose.msra.mxu0 0.0
  %869 = vmatprep.subr.mxu0 0.0
  %870 = vmatpush1.xpose.msra.mxu0 0.0
  %871 = vmatprep.subr.mxu0 0.0
  %872 = vmatpush1.xpose.msra.mxu0 0.0
  %873 = vmatprep.subr.mxu0 0.0
  %874 = vmatpush1.xpose.msra.mxu0 0.0
  %875 = vmatprep.subr.mxu0 0.0
  %876 = vmatpush1.xpose.msra.mxu0 0.0
  %877 = vmatprep.subr.mxu0 0.0
  %878 = vmatpush1.xpose.msra.mxu0 0.0
  %879 = vmatprep.subr.mxu0 0.0
  %880 = vmatpush1.xpose.msra.mxu0 0.0
  %881 = vmatprep.subr.mxu0 0.0
  %882 = vmatpush1.xpose.msra.mxu0 0.0
  %883 = vmatprep.subr.mxu0 0.0
  %884 = vmatpush1.xpose.msra.mxu0 0.0
  %885 = vmatprep.subr.mxu0 0.0
  %886 = vmatpush1.xpose.msra.mxu0 0.0
  %887 = vmatprep.subr.mxu0 0.0
  %888 = vmatpush1.xpose.msra.mxu0 0.0
  %889 = vmatprep.subr.mxu0 0.0
  %890 = vmatpush1.xpose.msra.mxu0 0.0
  %891 = vmatprep.subr.mxu0 0.0
  %892 = vmatpush1.xpose.msra.mxu0 0.0
  %893 = vmatprep.subr.mxu0 0.0
  %894 = vmatpush1.xpose.msra.mxu0 0.0
  %895 = vmatprep.subr.mxu0 0.0
  %896 = vmatpush1.xpose.msra.mxu0 0.0
  %897 = vmatprep.subr.mxu0 0.0
  %898 = vmatpush1.xpose.msra.mxu0 0.0
  %899 = vmatprep.subr.mxu0 0.0
  %900 = vmatpush1.xpose.msra.mxu0 0.0
  %901 = vmatprep.subr.mxu0 0.0
  %902 = vmatpush1.xpose.msra.mxu0 0.0
  %903 = vmatprep.subr.mxu0 0.0
  %904 = vmatpush1.xpose.msra.mxu0 0.0
  %905 = vmatprep.subr.mxu0 0.0
  %906 = vmatpush1.xpose.msra.mxu0 0.0
  %907 = vmatprep.subr.mxu0 0.0
  %908 = vmatpush1.xpose.msra.mxu0 0.0
  %909 = vmatprep.mubr.f32.mxu0 0.0
  %910 = vmatmul.mubr.f32.gmra.mrb[0].mxu0 %v57
  %v911 = vpop.f32.mrb[0].mxu0
  %v912 = vadd.f32 0.0, %v911
  %v913 = vpop.f32.mrb[0].mxu0
  %914 = vmatprep.mubr.f32.mxu0 0.0
  %915 = vmatmul.mubr.f32.gmra.mrb[0].mxu0 %v60
  %v916 = vpop.f32.mrb[0].mxu0
  %v917 = vadd.f32 0.0, %v916
  %v918 = vpop.f32.mrb[0].mxu0
  %919 = vdwg.mxu0
  %v921 = vsel %vm55, %v48, 0
  %923 = vmatprep.subr.mxu0 0.0
  %924 = vmatpush1.xpose.msra.mxu0 %v921
  %925 = vmatprep.subr.mxu0 0.0
  %926 = vmatpush1.xpose.msra.mxu0 0.0
  %927 = vmatprep.subr.mxu0 0.0
  %928 = vmatpush1.xpose.msra.mxu0 0.0
  %929 = vmatprep.subr.mxu0 0.0
  %930 = vmatpush1.xpose.msra.mxu0 0.0
  %931 = vmatprep.subr.mxu0 0.0
  %932 = vmatpush1.xpose.msra.mxu0 0.0
  %933 = vmatprep.subr.mxu0 0.0
  %934 = vmatpush1.xpose.msra.mxu0 0.0
  %935 = vmatprep.subr.mxu0 0.0
  %936 = vmatpush1.xpose.msra.mxu0 0.0
  %937 = vmatprep.subr.mxu0 0.0
  %938 = vmatpush1.xpose.msra.mxu0 0.0
  %939 = vmatprep.subr.mxu0 0.0
  %940 = vmatpush1.xpose.msra.mxu0 0.0
  %941 = vmatprep.subr.mxu0 0.0
  %942 = vmatpush1.xpose.msra.mxu0 0.0
  %943 = vmatprep.subr.mxu0 0.0
  %944 = vmatpush1.xpose.msra.mxu0 0.0
  %945 = vmatprep.subr.mxu0 0.0
  %946 = vmatpush1.xpose.msra.mxu0 0.0
  %947 = vmatprep.subr.mxu0 0.0
  %948 = vmatpush1.xpose.msra.mxu0 0.0
  %949 = vmatprep.subr.mxu0 0.0
  %950 = vmatpush1.xpose.msra.mxu0 0.0
  %951 = vmatprep.subr.mxu0 0.0
  %952 = vmatpush1.xpose.msra.mxu0 0.0
  %953 = vmatprep.subr.mxu0 0.0
  %954 = vmatpush1.xpose.msra.mxu0 0.0
  %955 = vmatprep.subr.mxu0 0.0
  %956 = vmatpush1.xpose.msra.mxu0 0.0
  %957 = vmatprep.subr.mxu0 0.0
  %958 = vmatpush1.xpose.msra.mxu0 0.0
  %959 = vmatprep.subr.mxu0 0.0
  %960 = vmatpush1.xpose.msra.mxu0 0.0
  %961 = vmatprep.subr.mxu0 0.0
  %962 = vmatpush1.xpose.msra.mxu0 0.0
  %963 = vmatprep.subr.mxu0 0.0
  %964 = vmatpush1.xpose.msra.mxu0 0.0
  %965 = vmatprep.subr.mxu0 0.0
  %966 = vmatpush1.xpose.msra.mxu0 0.0
  %967 = vmatprep.subr.mxu0 0.0
  %968 = vmatpush1.xpose.msra.mxu0 0.0
  %969 = vmatprep.subr.mxu0 0.0
  %970 = vmatpush1.xpose.msra.mxu0 0.0
  %971 = vmatprep.subr.mxu0 0.0
  %972 = vmatpush1.xpose.msra.mxu0 0.0
  %973 = vmatprep.subr.mxu0 0.0
  %974 = vmatpush1.xpose.msra.mxu0 0.0
  %975 = vmatprep.subr.mxu0 0.0
  %976 = vmatpush1.xpose.msra.mxu0 0.0
  %977 = vmatprep.subr.mxu0 0.0
  %978 = vmatpush1.xpose.msra.mxu0 0.0
  %979 = vmatprep.subr.mxu0 0.0
  %980 = vmatpush1.xpose.msra.mxu0 0.0
  %981 = vmatprep.subr.mxu0 0.0
  %982 = vmatpush1.xpose.msra.mxu0 0.0
  %983 = vmatprep.subr.mxu0 0.0
  %984 = vmatpush1.xpose.msra.mxu0 0.0
  %985 = vmatprep.subr.mxu0 0.0
  %986 = vmatpush1.xpose.msra.mxu0 0.0
  %987 = vmatprep.mubr.f32.mxu0 0.0
  %988 = vmatmul.mubr.f32.gmra.mrb[0].mxu0 %v57
  %v989 = vpop.f32.mrb[0].mxu0
  %v990 = vadd.f32 0.0, %v989
  %v991 = vpop.f32.mrb[0].mxu0
  %992 = vmatprep.mubr.f32.mxu0 0.0
  %993 = vmatmul.mubr.f32.gmra.mrb[0].mxu0 %v60
  %v994 = vpop.f32.mrb[0].mxu0
  %v995 = vadd.f32 0.0, %v994
  %v996 = vpop.f32.mrb[0].mxu0
  %997 = vdwg.mxu0
  %v998 = vld [vmem:[%s3] sm:$0xff]
  %v999 = vld [vmem:[%s3 + $0x8] sm:$0xff]
  %vm1000 = vcmask 64512
  %v1002 = vsel %vm1000, %v132, 0
  %v1005 = vsel %vm1000, %v137, 0
  %v1008 = vsel %vm1000, %v444, 0
  %v1011 = vsel %vm1000, %v449, 0
  %1013 = vmatprep.subr.mxu0 0.0
  %1014 = vmatpush1.xpose.msra.mxu0 %v1008
  %1015 = vmatprep.subr.mxu0 0.0
  %1016 = vmatpush1.xpose.msra.mxu0 %v1011
  %1017 = vmatprep.subr.mxu0 0.0
  %1018 = vmatpush1.xpose.msra.mxu0 0.0
  %1019 = vmatprep.subr.mxu0 0.0
  %1020 = vmatpush1.xpose.msra.mxu0 0.0
  %1021 = vmatprep.subr.mxu0 0.0
  %1022 = vmatpush1.xpose.msra.mxu0 0.0
  %1023 = vmatprep.subr.mxu0 0.0
  %1024 = vmatpush1.xpose.msra.mxu0 0.0
  %1025 = vmatprep.subr.mxu0 0.0
  %1026 = vmatpush1.xpose.msra.mxu0 0.0
  %1027 = vmatprep.subr.mxu0 0.0
  %1028 = vmatpush1.xpose.msra.mxu0 0.0
  %1029 = vmatprep.subr.mxu0 0.0
  %1030 = vmatpush1.xpose.msra.mxu0 0.0
  %1031 = vmatprep.subr.mxu0 0.0
  %1032 = vmatpush1.xpose.msra.mxu0 0.0
  %1033 = vmatprep.subr.mxu0 0.0
  %1034 = vmatpush1.xpose.msra.mxu0 0.0
  %1035 = vmatprep.subr.mxu0 0.0
  %1036 = vmatpush1.xpose.msra.mxu0 0.0
  %1037 = vmatprep.subr.mxu0 0.0
  %1038 = vmatpush1.xpose.msra.mxu0 0.0
  %1039 = vmatprep.subr.mxu0 0.0
  %1040 = vmatpush1.xpose.msra.mxu0 0.0
  %1041 = vmatprep.subr.mxu0 0.0
  %1042 = vmatpush1.xpose.msra.mxu0 0.0
  %1043 = vmatprep.subr.mxu0 0.0
  %1044 = vmatpush1.xpose.msra.mxu0 0.0
  %1045 = vmatprep.subr.mxu0 0.0
  %1046 = vmatpush1.xpose.msra.mxu0 0.0
  %1047 = vmatprep.subr.mxu0 0.0
  %1048 = vmatpush1.xpose.msra.mxu0 0.0
  %1049 = vmatprep.subr.mxu0 0.0
  %1050 = vmatpush1.xpose.msra.mxu0 0.0
  %1051 = vmatprep.subr.mxu0 0.0
  %1052 = vmatpush1.xpose.msra.mxu0 0.0
  %1053 = vmatprep.subr.mxu0 0.0
  %1054 = vmatpush1.xpose.msra.mxu0 0.0
  %1055 = vmatprep.subr.mxu0 0.0
  %1056 = vmatpush1.xpose.msra.mxu0 0.0
  %1057 = vmatprep.subr.mxu0 0.0
  %1058 = vmatpush1.xpose.msra.mxu0 0.0
  %1059 = vmatprep.subr.mxu0 0.0
  %1060 = vmatpush1.xpose.msra.mxu0 0.0
  %1061 = vmatprep.subr.mxu0 0.0
  %1062 = vmatpush1.xpose.msra.mxu0 0.0
  %1063 = vmatprep.subr.mxu0 0.0
  %1064 = vmatpush1.xpose.msra.mxu0 0.0
  %1065 = vmatprep.subr.mxu0 0.0
  %1066 = vmatpush1.xpose.msra.mxu0 0.0
  %1067 = vmatprep.subr.mxu0 0.0
  %1068 = vmatpush1.xpose.msra.mxu0 0.0
  %1069 = vmatprep.subr.mxu0 0.0
  %1070 = vmatpush1.xpose.msra.mxu0 0.0
  %1071 = vmatprep.subr.mxu0 0.0
  %1072 = vmatpush1.xpose.msra.mxu0 0.0
  %1073 = vmatprep.subr.mxu0 0.0
  %1074 = vmatpush1.xpose.msra.mxu0 0.0
  %1075 = vmatprep.subr.mxu0 0.0
  %1076 = vmatpush1.xpose.msra.mxu0 0.0
  %1077 = vmatprep.mubr.f32.mxu0 0.0
  %1078 = vmatmul.mubr.f32.gmra.mrb[0].mxu0 %v1002
  %v1079 = vpop.f32.mrb[0].mxu0
  %v1080 = vadd.f32 %v998, %v1079
  %v1081 = vpop.f32.mrb[0].mxu0
  %1082 = vmatprep.mubr.f32.mxu0 0.0
  %1083 = vmatmul.mubr.f32.gmra.mrb[0].mxu0 %v1005
  %v1084 = vpop.f32.mrb[0].mxu0
  %v1085 = vadd.f32 %v999, %v1084
  %v1086 = vpop.f32.mrb[0].mxu0
  %1087 = vdwg.mxu0
  %v1089 = vsel %vm1000, %v210, 0
  %v1092 = vsel %vm1000, %v215, 0
  %v1095 = vsel %vm1000, %v522, 0
  %v1098 = vsel %vm1000, %v527, 0
  %1100 = vmatprep.subr.mxu0 0.0
  %1101 = vmatpush1.xpose.msra.mxu0 %v1095
  %1102 = vmatprep.subr.mxu0 0.0
  %1103 = vmatpush1.xpose.msra.mxu0 %v1098
  %1104 = vmatprep.subr.mxu0 0.0
  %1105 = vmatpush1.xpose.msra.mxu0 0.0
  %1106 = vmatprep.subr.mxu0 0.0
  %1107 = vmatpush1.xpose.msra.mxu0 0.0
  %1108 = vmatprep.subr.mxu0 0.0
  %1109 = vmatpush1.xpose.msra.mxu0 0.0
  %1110 = vmatprep.subr.mxu0 0.0
  %1111 = vmatpush1.xpose.msra.mxu0 0.0
  %1112 = vmatprep.subr.mxu0 0.0
  %1113 = vmatpush1.xpose.msra.mxu0 0.0
  %1114 = vmatprep.subr.mxu0 0.0
  %1115 = vmatpush1.xpose.msra.mxu0 0.0
  %1116 = vmatprep.subr.mxu0 0.0
  %1117 = vmatpush1.xpose.msra.mxu0 0.0
  %1118 = vmatprep.subr.mxu0 0.0
  %1119 = vmatpush1.xpose.msra.mxu0 0.0
  %1120 = vmatprep.subr.mxu0 0.0
  %1121 = vmatpush1.xpose.msra.mxu0 0.0
  %1122 = vmatprep.subr.mxu0 0.0
  %1123 = vmatpush1.xpose.msra.mxu0 0.0
  %1124 = vmatprep.subr.mxu0 0.0
  %1125 = vmatpush1.xpose.msra.mxu0 0.0
  %1126 = vmatprep.subr.mxu0 0.0
  %1127 = vmatpush1.xpose.msra.mxu0 0.0
  %1128 = vmatprep.subr.mxu0 0.0
  %1129 = vmatpush1.xpose.msra.mxu0 0.0
  %1130 = vmatprep.subr.mxu0 0.0
  %1131 = vmatpush1.xpose.msra.mxu0 0.0
  %1132 = vmatprep.subr.mxu0 0.0
  %1133 = vmatpush1.xpose.msra.mxu0 0.0
  %1134 = vmatprep.subr.mxu0 0.0
  %1135 = vmatpush1.xpose.msra.mxu0 0.0
  %1136 = vmatprep.subr.mxu0 0.0
  %1137 = vmatpush1.xpose.msra.mxu0 0.0
  %1138 = vmatprep.subr.mxu0 0.0
  %1139 = vmatpush1.xpose.msra.mxu0 0.0
  %1140 = vmatprep.subr.mxu0 0.0
  %1141 = vmatpush1.xpose.msra.mxu0 0.0
  %1142 = vmatprep.subr.mxu0 0.0
  %1143 = vmatpush1.xpose.msra.mxu0 0.0
  %1144 = vmatprep.subr.mxu0 0.0
  %1145 = vmatpush1.xpose.msra.mxu0 0.0
  %1146 = vmatprep.subr.mxu0 0.0
  %1147 = vmatpush1.xpose.msra.mxu0 0.0
  %1148 = vmatprep.subr.mxu0 0.0
  %1149 = vmatpush1.xpose.msra.mxu0 0.0
  %1150 = vmatprep.subr.mxu0 0.0
  %1151 = vmatpush1.xpose.msra.mxu0 0.0
  %1152 = vmatprep.subr.mxu0 0.0
  %1153 = vmatpush1.xpose.msra.mxu0 0.0
  %1154 = vmatprep.subr.mxu0 0.0
  %1155 = vmatpush1.xpose.msra.mxu0 0.0
  %1156 = vmatprep.subr.mxu0 0.0
  %1157 = vmatpush1.xpose.msra.mxu0 0.0
  %1158 = vmatprep.subr.mxu0 0.0
  %1159 = vmatpush1.xpose.msra.mxu0 0.0
  %1160 = vmatprep.subr.mxu0 0.0
  %1161 = vmatpush1.xpose.msra.mxu0 0.0
  %1162 = vmatprep.subr.mxu0 0.0
  %1163 = vmatpush1.xpose.msra.mxu0 0.0
  %1164 = vmatprep.mubr.f32.mxu0 0.0
  %1165 = vmatmul.mubr.f32.gmra.mrb[0].mxu0 %v1089
  %v1166 = vpop.f32.mrb[0].mxu0
  %v1167 = vadd.f32 %v998, %v1166
  %v1168 = vpop.f32.mrb[0].mxu0
  %1169 = vmatprep.mubr.f32.mxu0 0.0
  %1170 = vmatmul.mubr.f32.gmra.mrb[0].mxu0 %v1092
  %v1171 = vpop.f32.mrb[0].mxu0
  %v1172 = vadd.f32 %v999, %v1171
  %v1173 = vpop.f32.mrb[0].mxu0
  %1174 = vdwg.mxu0
  %v1176 = vsel %vm1000, %v288, 0
  %v1179 = vsel %vm1000, %v293, 0
  %v1182 = vsel %vm1000, %v600, 0
  %v1185 = vsel %vm1000, %v605, 0
  %1187 = vmatprep.subr.mxu0 0.0
  %1188 = vmatpush1.xpose.msra.mxu0 %v1182
  %1189 = vmatprep.subr.mxu0 0.0
  %1190 = vmatpush1.xpose.msra.mxu0 %v1185
  %1191 = vmatprep.subr.mxu0 0.0
  %1192 = vmatpush1.xpose.msra.mxu0 0.0
  %1193 = vmatprep.subr.mxu0 0.0
  %1194 = vmatpush1.xpose.msra.mxu0 0.0
  %1195 = vmatprep.subr.mxu0 0.0
  %1196 = vmatpush1.xpose.msra.mxu0 0.0
  %1197 = vmatprep.subr.mxu0 0.0
  %1198 = vmatpush1.xpose.msra.mxu0 0.0
  %1199 = vmatprep.subr.mxu0 0.0
  %1200 = vmatpush1.xpose.msra.mxu0 0.0
  %1201 = vmatprep.subr.mxu0 0.0
  %1202 = vmatpush1.xpose.msra.mxu0 0.0
  %1203 = vmatprep.subr.mxu0 0.0
  %1204 = vmatpush1.xpose.msra.mxu0 0.0
  %1205 = vmatprep.subr.mxu0 0.0
  %1206 = vmatpush1.xpose.msra.mxu0 0.0
  %1207 = vmatprep.subr.mxu0 0.0
  %1208 = vmatpush1.xpose.msra.mxu0 0.0
  %1209 = vmatprep.subr.mxu0 0.0
  %1210 = vmatpush1.xpose.msra.mxu0 0.0
  %1211 = vmatprep.subr.mxu0 0.0
  %1212 = vmatpush1.xpose.msra.mxu0 0.0
  %1213 = vmatprep.subr.mxu0 0.0
  %1214 = vmatpush1.xpose.msra.mxu0 0.0
  %1215 = vmatprep.subr.mxu0 0.0
  %1216 = vmatpush1.xpose.msra.mxu0 0.0
  %1217 = vmatprep.subr.mxu0 0.0
  %1218 = vmatpush1.xpose.msra.mxu0 0.0
  %1219 = vmatprep.subr.mxu0 0.0
  %1220 = vmatpush1.xpose.msra.mxu0 0.0
  %1221 = vmatprep.subr.mxu0 0.0
  %1222 = vmatpush1.xpose.msra.mxu0 0.0
  %1223 = vmatprep.subr.mxu0 0.0
  %1224 = vmatpush1.xpose.msra.mxu0 0.0
  %1225 = vmatprep.subr.mxu0 0.0
  %1226 = vmatpush1.xpose.msra.mxu0 0.0
  %1227 = vmatprep.subr.mxu0 0.0
  %1228 = vmatpush1.xpose.msra.mxu0 0.0
  %1229 = vmatprep.subr.mxu0 0.0
  %1230 = vmatpush1.xpose.msra.mxu0 0.0
  %1231 = vmatprep.subr.mxu0 0.0
  %1232 = vmatpush1.xpose.msra.mxu0 0.0
  %1233 = vmatprep.subr.mxu0 0.0
  %1234 = vmatpush1.xpose.msra.mxu0 0.0
  %1235 = vmatprep.subr.mxu0 0.0
  %1236 = vmatpush1.xpose.msra.mxu0 0.0
  %1237 = vmatprep.subr.mxu0 0.0
  %1238 = vmatpush1.xpose.msra.mxu0 0.0
  %1239 = vmatprep.subr.mxu0 0.0
  %1240 = vmatpush1.xpose.msra.mxu0 0.0
  %1241 = vmatprep.subr.mxu0 0.0
  %1242 = vmatpush1.xpose.msra.mxu0 0.0
  %1243 = vmatprep.subr.mxu0 0.0
  %1244 = vmatpush1.xpose.msra.mxu0 0.0
  %1245 = vmatprep.subr.mxu0 0.0
  %1246 = vmatpush1.xpose.msra.mxu0 0.0
  %1247 = vmatprep.subr.mxu0 0.0
  %1248 = vmatpush1.xpose.msra.mxu0 0.0
  %1249 = vmatprep.subr.mxu0 0.0
  %1250 = vmatpush1.xpose.msra.mxu0 0.0
  %1251 = vmatprep.mubr.f32.mxu0 0.0
  %1252 = vmatmul.mubr.f32.gmra.mrb[0].mxu0 %v1176
  %v1253 = vpop.f32.mrb[0].mxu0
  %v1254 = vadd.f32 %v998, %v1253
  %v1255 = vpop.f32.mrb[0].mxu0
  %1256 = vmatprep.mubr.f32.mxu0 0.0
  %1257 = vmatmul.mubr.f32.gmra.mrb[0].mxu0 %v1179
  %v1258 = vpop.f32.mrb[0].mxu0
  %v1259 = vadd.f32 %v999, %v1258
  %v1260 = vpop.f32.mrb[0].mxu0
  %1261 = vdwg.mxu0
  %v1263 = vsel %vm1000, %v366, 0
  %v1266 = vsel %vm1000, %v371, 0
  %v1269 = vsel %vm1000, %v678, 0
  %v1272 = vsel %vm1000, %v683, 0
  %1274 = vmatprep.subr.mxu0 0.0
  %1275 = vmatpush1.xpose.msra.mxu0 %v1269
  %1276 = vmatprep.subr.mxu0 0.0
  %1277 = vmatpush1.xpose.msra.mxu0 %v1272
  %1278 = vmatprep.subr.mxu0 0.0
  %1279 = vmatpush1.xpose.msra.mxu0 0.0
  %1280 = vmatprep.subr.mxu0 0.0
  %1281 = vmatpush1.xpose.msra.mxu0 0.0
  %1282 = vmatprep.subr.mxu0 0.0
  %1283 = vmatpush1.xpose.msra.mxu0 0.0
  %1284 = vmatprep.subr.mxu0 0.0
  %1285 = vmatpush1.xpose.msra.mxu0 0.0
  %1286 = vmatprep.subr.mxu0 0.0
  %1287 = vmatpush1.xpose.msra.mxu0 0.0
  %1288 = vmatprep.subr.mxu0 0.0
  %1289 = vmatpush1.xpose.msra.mxu0 0.0
  %1290 = vmatprep.subr.mxu0 0.0
  %1291 = vmatpush1.xpose.msra.mxu0 0.0
  %1292 = vmatprep.subr.mxu0 0.0
  %1293 = vmatpush1.xpose.msra.mxu0 0.0
  %1294 = vmatprep.subr.mxu0 0.0
  %1295 = vmatpush1.xpose.msra.mxu0 0.0
  %1296 = vmatprep.subr.mxu0 0.0
  %1297 = vmatpush1.xpose.msra.mxu0 0.0
  %1298 = vmatprep.subr.mxu0 0.0
  %1299 = vmatpush1.xpose.msra.mxu0 0.0
  %1300 = vmatprep.subr.mxu0 0.0
  %1301 = vmatpush1.xpose.msra.mxu0 0.0
  %1302 = vmatprep.subr.mxu0 0.0
  %1303 = vmatpush1.xpose.msra.mxu0 0.0
  %1304 = vmatprep.subr.mxu0 0.0
  %1305 = vmatpush1.xpose.msra.mxu0 0.0
  %1306 = vmatprep.subr.mxu0 0.0
  %1307 = vmatpush1.xpose.msra.mxu0 0.0
  %1308 = vmatprep.subr.mxu0 0.0
  %1309 = vmatpush1.xpose.msra.mxu0 0.0
  %1310 = vmatprep.subr.mxu0 0.0
  %1311 = vmatpush1.xpose.msra.mxu0 0.0
  %1312 = vmatprep.subr.mxu0 0.0
  %1313 = vmatpush1.xpose.msra.mxu0 0.0
  %1314 = vmatprep.subr.mxu0 0.0
  %1315 = vmatpush1.xpose.msra.mxu0 0.0
  %1316 = vmatprep.subr.mxu0 0.0
  %1317 = vmatpush1.xpose.msra.mxu0 0.0
  %1318 = vmatprep.subr.mxu0 0.0
  %1319 = vmatpush1.xpose.msra.mxu0 0.0
  %1320 = vmatprep.subr.mxu0 0.0
  %1321 = vmatpush1.xpose.msra.mxu0 0.0
  %1322 = vmatprep.subr.mxu0 0.0
  %1323 = vmatpush1.xpose.msra.mxu0 0.0
  %1324 = vmatprep.subr.mxu0 0.0
  %1325 = vmatpush1.xpose.msra.mxu0 0.0
  %1326 = vmatprep.subr.mxu0 0.0
  %1327 = vmatpush1.xpose.msra.mxu0 0.0
  %1328 = vmatprep.subr.mxu0 0.0
  %1329 = vmatpush1.xpose.msra.mxu0 0.0
  %1330 = vmatprep.subr.mxu0 0.0
  %1331 = vmatpush1.xpose.msra.mxu0 0.0
  %1332 = vmatprep.subr.mxu0 0.0
  %1333 = vmatpush1.xpose.msra.mxu0 0.0
  %1334 = vmatprep.subr.mxu0 0.0
  %1335 = vmatpush1.xpose.msra.mxu0 0.0
  %1336 = vmatprep.subr.mxu0 0.0
  %1337 = vmatpush1.xpose.msra.mxu0 0.0
  %1338 = vmatprep.mubr.f32.mxu0 0.0
  %1339 = vmatmul.mubr.f32.gmra.mrb[0].mxu0 %v1263
  %v1340 = vpop.f32.mrb[0].mxu0
  %v1341 = vadd.f32 %v998, %v1340
  %v1342 = vpop.f32.mrb[0].mxu0
  %1343 = vmatprep.mubr.f32.mxu0 0.0
  %1344 = vmatmul.mubr.f32.gmra.mrb[0].mxu0 %v1266
  %v1345 = vpop.f32.mrb[0].mxu0
  %v1346 = vadd.f32 %v999, %v1345
  %v1347 = vpop.f32.mrb[0].mxu0
  %1348 = vdwg.mxu0
  %vm1349 = vcmask 130048
  %v1350 = vsel %vm1349, %v1080, -inf
  %1351 = vmax.xlane.f32.xlu0 %v1350
  %v1352 = vpop.xlane.xlu0 %1351
  %v1353 = vsel %vm1349, %v1085, -inf
  %1354 = vmax.xlane.f32.xlu0 %v1353
  %v1355 = vpop.xlane.xlu0 %1354
  %v1356 = vsel %vm1349, %v1167, -inf
  %1357 = vmax.xlane.f32.xlu0 %v1356
  %v1358 = vpop.xlane.xlu0 %1357
  %v1359 = vsel %vm1349, %v1172, -inf
  %1360 = vmax.xlane.f32.xlu0 %v1359
  %v1361 = vpop.xlane.xlu0 %1360
  %v1362 = vsel %vm1349, %v1254, -inf
  %1363 = vmax.xlane.f32.xlu0 %v1362
  %v1364 = vpop.xlane.xlu0 %1363
  %v1365 = vsel %vm1349, %v1259, -inf
  %1366 = vmax.xlane.f32.xlu0 %v1365
  %v1367 = vpop.xlane.xlu0 %1366
  %v1368 = vsel %vm1349, %v1341, -inf
  %1369 = vmax.xlane.f32.xlu0 %v1368
  %v1370 = vpop.xlane.xlu0 %1369
  %v1371 = vsel %vm1349, %v1346, -inf
  %1372 = vmax.xlane.f32.xlu0 %v1371
  %v1373 = vpop.xlane.xlu0 %1372
  %v1374 = vsub.f32 %v1080, %v1352
  %v1375 = vsub.f32 %v1085, %v1355
  %v1376 = vsub.f32 %v1167, %v1358
  %v1377 = vsub.f32 %v1172, %v1361
  %v1378 = vsub.f32 %v1254, %v1364
  %v1379 = vsub.f32 %v1259, %v1367
  %v1380 = vsub.f32 %v1341, %v1370
  %v1381 = vsub.f32 %v1346, %v1373
  %v1382 = vmul.f32 %v1374, 1.442695
  %v1383 = vpow.pop %v1382
  %v1384 = vmul.f32 %v1375, 1.442695
  %v1385 = vpow.pop %v1384
  %v1386 = vmul.f32 %v1376, 1.442695
  %v1387 = vpow.pop %v1386
  %v1388 = vmul.f32 %v1377, 1.442695
  %v1389 = vpow.pop %v1388
  %v1390 = vmul.f32 %v1378, 1.442695
  %v1391 = vpow.pop %v1390
  %v1392 = vmul.f32 %v1379, 1.442695
  %v1393 = vpow.pop %v1392
  %v1394 = vmul.f32 %v1380, 1.442695
  %v1395 = vpow.pop %v1394
  %v1396 = vmul.f32 %v1381, 1.442695
  %v1397 = vpow.pop %v1396
  %v1398 = vsel %vm1349, %v1383, 0.0
  %1399 = vadd.xlane.f32.xlu0 %v1398
  %v1400 = vpop.xlane.xlu0 %1399
  %v1401 = vsel %vm1349, %v1385, 0.0
  %1402 = vadd.xlane.f32.xlu0 %v1401
  %v1403 = vpop.xlane.xlu0 %1402
  %v1404 = vsel %vm1349, %v1387, 0.0
  %1405 = vadd.xlane.f32.xlu0 %v1404
  %v1406 = vpop.xlane.xlu0 %1405
  %v1407 = vsel %vm1349, %v1389, 0.0
  %1408 = vadd.xlane.f32.xlu0 %v1407
  %v1409 = vpop.xlane.xlu0 %1408
  %v1410 = vsel %vm1349, %v1391, 0.0
  %1411 = vadd.xlane.f32.xlu0 %v1410
  %v1412 = vpop.xlane.xlu0 %1411
  %v1413 = vsel %vm1349, %v1393, 0.0
  %1414 = vadd.xlane.f32.xlu0 %v1413
  %v1415 = vpop.xlane.xlu0 %1414
  %v1416 = vsel %vm1349, %v1395, 0.0
  %1417 = vadd.xlane.f32.xlu0 %v1416
  %v1418 = vpop.xlane.xlu0 %1417
  %v1419 = vsel %vm1349, %v1397, 0.0
  %1420 = vadd.xlane.f32.xlu0 %v1419
  %v1421 = vpop.xlane.xlu0 %1420
  %v1422 = vrcp.pop %v1400
  %v1423 = vrcp.pop %v1403
  %v1424 = vrcp.pop %v1406
  %v1425 = vrcp.pop %v1409
  %v1426 = vrcp.pop %v1412
  %v1427 = vrcp.pop %v1415
  %v1428 = vrcp.pop %v1418
  %v1429 = vrcp.pop %v1421
  %v1430 = vmul.f32 %v1400, %v1422
  %v1431 = vmul.f32 %v1403, %v1423
  %v1432 = vmul.f32 %v1406, %v1424
  %v1433 = vmul.f32 %v1409, %v1425
  %v1434 = vmul.f32 %v1412, %v1426
  %v1435 = vmul.f32 %v1415, %v1427
  %v1436 = vmul.f32 %v1418, %v1428
  %v1437 = vmul.f32 %v1421, %v1429
  %v1438 = vsub.f32 2.0, %v1430
  %v1439 = vsub.f32 2.0, %v1431
  %v1440 = vsub.f32 2.0, %v1432
  %v1441 = vsub.f32 2.0, %v1433
  %v1442 = vsub.f32 2.0, %v1434
  %v1443 = vsub.f32 2.0, %v1435
  %v1444 = vsub.f32 2.0, %v1436
  %v1445 = vsub.f32 2.0, %v1437
  %v1446 = vmul.f32 %v1422, %v1438
  %v1447 = vmul.f32 %v1423, %v1439
  %v1448 = vmul.f32 %v1424, %v1440
  %v1449 = vmul.f32 %v1425, %v1441
  %v1450 = vmul.f32 %v1426, %v1442
  %v1451 = vmul.f32 %v1427, %v1443
  %v1452 = vmul.f32 %v1428, %v1444
  %v1453 = vmul.f32 %v1429, %v1445
  %v1454 = vmul.f32 %v1383, %v1446
  %v1455 = vmul.f32 %v1385, %v1447
  %v1456 = vmul.f32 %v1387, %v1448
  %v1457 = vmul.f32 %v1389, %v1449
  %v1458 = vmul.f32 %v1391, %v1450
  %v1459 = vmul.f32 %v1393, %v1451
  %v1460 = vmul.f32 %v1395, %v1452
  %v1461 = vmul.f32 %v1397, %v1453
  %v1463 = vsel %vm1349, %v1454, 0
  %v1466 = vsel %vm1349, %v1455, 0
  %1468 = vmatprep.subr.mxu0 0.0
  %1469 = vmatpush1.msra.mxu0 %v756
  %1470 = vmatprep.subr.mxu0 0.0
  %1471 = vmatpush1.msra.mxu0 %v761
  %1472 = vmatprep.subr.mxu0 0.0
  %1473 = vmatpush1.msra.mxu0 0.0
  %1474 = vmatprep.subr.mxu0 0.0
  %1475 = vmatpush1.msra.mxu0 0.0
  %1476 = vmatprep.subr.mxu0 0.0
  %1477 = vmatpush1.msra.mxu0 0.0
  %1478 = vmatprep.subr.mxu0 0.0
  %1479 = vmatpush1.msra.mxu0 0.0
  %1480 = vmatprep.subr.mxu0 0.0
  %1481 = vmatpush1.msra.mxu0 0.0
  %1482 = vmatprep.subr.mxu0 0.0
  %1483 = vmatpush1.msra.mxu0 0.0
  %1484 = vmatprep.subr.mxu0 0.0
  %1485 = vmatpush1.msra.mxu0 0.0
  %1486 = vmatprep.subr.mxu0 0.0
  %1487 = vmatpush1.msra.mxu0 0.0
  %1488 = vmatprep.subr.mxu0 0.0
  %1489 = vmatpush1.msra.mxu0 0.0
  %1490 = vmatprep.subr.mxu0 0.0
  %1491 = vmatpush1.msra.mxu0 0.0
  %1492 = vmatprep.subr.mxu0 0.0
  %1493 = vmatpush1.msra.mxu0 0.0
  %1494 = vmatprep.subr.mxu0 0.0
  %1495 = vmatpush1.msra.mxu0 0.0
  %1496 = vmatprep.subr.mxu0 0.0
  %1497 = vmatpush1.msra.mxu0 0.0
  %1498 = vmatprep.subr.mxu0 0.0
  %1499 = vmatpush1.msra.mxu0 0.0
  %1500 = vmatprep.subr.mxu0 0.0
  %1501 = vmatpush1.msra.mxu0 0.0
  %1502 = vmatprep.subr.mxu0 0.0
  %1503 = vmatpush1.msra.mxu0 0.0
  %1504 = vmatprep.subr.mxu0 0.0
  %1505 = vmatpush1.msra.mxu0 0.0
  %1506 = vmatprep.subr.mxu0 0.0
  %1507 = vmatpush1.msra.mxu0 0.0
  %1508 = vmatprep.subr.mxu0 0.0
  %1509 = vmatpush1.msra.mxu0 0.0
  %1510 = vmatprep.subr.mxu0 0.0
  %1511 = vmatpush1.msra.mxu0 0.0
  %1512 = vmatprep.subr.mxu0 0.0
  %1513 = vmatpush1.msra.mxu0 0.0
  %1514 = vmatprep.subr.mxu0 0.0
  %1515 = vmatpush1.msra.mxu0 0.0
  %1516 = vmatprep.subr.mxu0 0.0
  %1517 = vmatpush1.msra.mxu0 0.0
  %1518 = vmatprep.subr.mxu0 0.0
  %1519 = vmatpush1.msra.mxu0 0.0
  %1520 = vmatprep.subr.mxu0 0.0
  %1521 = vmatpush1.msra.mxu0 0.0
  %1522 = vmatprep.subr.mxu0 0.0
  %1523 = vmatpush1.msra.mxu0 0.0
  %1524 = vmatprep.subr.mxu0 0.0
  %1525 = vmatpush1.msra.mxu0 0.0
  %1526 = vmatprep.subr.mxu0 0.0
  %1527 = vmatpush1.msra.mxu0 0.0
  %1528 = vmatprep.subr.mxu0 0.0
  %1529 = vmatpush1.msra.mxu0 0.0
  %1530 = vmatprep.subr.mxu0 0.0
  %1531 = vmatpush1.msra.mxu0 0.0
  %1532 = vmatprep.mubr.f32.mxu0 0.0
  %1533 = vmatmul.mubr.f32.gmra.mrb[0].mxu0 %v1463
  %v1534 = vpop.f32.mrb[0].mxu0
  %v1535 = vadd.f32 0.0, %v1534
  %v1536 = vpop.f32.mrb[0].mxu0
  %1537 = vmatprep.mubr.f32.mxu0 0.0
  %1538 = vmatmul.mubr.f32.gmra.mrb[0].mxu0 %v1466
  %v1539 = vpop.f32.mrb[0].mxu0
  %v1540 = vadd.f32 0.0, %v1539
  %v1541 = vpop.f32.mrb[0].mxu0
  %1542 = vdwg.mxu0
  %v1544 = vsel %vm1349, %v1456, 0
  %v1547 = vsel %vm1349, %v1457, 0
  %1549 = vmatprep.subr.mxu0 0.0
  %1550 = vmatpush1.msra.mxu0 %v834
  %1551 = vmatprep.subr.mxu0 0.0
  %1552 = vmatpush1.msra.mxu0 %v839
  %1553 = vmatprep.subr.mxu0 0.0
  %1554 = vmatpush1.msra.mxu0 0.0
  %1555 = vmatprep.subr.mxu0 0.0
  %1556 = vmatpush1.msra.mxu0 0.0
  %1557 = vmatprep.subr.mxu0 0.0
  %1558 = vmatpush1.msra.mxu0 0.0
  %1559 = vmatprep.subr.mxu0 0.0
  %1560 = vmatpush1.msra.mxu0 0.0
  %1561 = vmatprep.subr.mxu0 0.0
  %1562 = vmatpush1.msra.mxu0 0.0
  %1563 = vmatprep.subr.mxu0 0.0
  %1564 = vmatpush1.msra.mxu0 0.0
  %1565 = vmatprep.subr.mxu0 0.0
  %1566 = vmatpush1.msra.mxu0 0.0
  %1567 = vmatprep.subr.mxu0 0.0
  %1568 = vmatpush1.msra.mxu0 0.0
  %1569 = vmatprep.subr.mxu0 0.0
  %1570 = vmatpush1.msra.mxu0 0.0
  %1571 = vmatprep.subr.mxu0 0.0
  %1572 = vmatpush1.msra.mxu0 0.0
  %1573 = vmatprep.subr.mxu0 0.0
  %1574 = vmatpush1.msra.mxu0 0.0
  %1575 = vmatprep.subr.mxu0 0.0
  %1576 = vmatpush1.msra.mxu0 0.0
  %1577 = vmatprep.subr.mxu0 0.0
  %1578 = vmatpush1.msra.mxu0 0.0
  %1579 = vmatprep.subr.mxu0 0.0
  %1580 = vmatpush1.msra.mxu0 0.0
  %1581 = vmatprep.subr.mxu0 0.0
  %1582 = vmatpush1.msra.mxu0 0.0
  %1583 = vmatprep.subr.mxu0 0.0
  %1584 = vmatpush1.msra.mxu0 0.0
  %1585 = vmatprep.subr.mxu0 0.0
  %1586 = vmatpush1.msra.mxu0 0.0
  %1587 = vmatprep.subr.mxu0 0.0
  %1588 = vmatpush1.msra.mxu0 0.0
  %1589 = vmatprep.subr.mxu0 0.0
  %1590 = vmatpush1.msra.mxu0 0.0
  %1591 = vmatprep.subr.mxu0 0.0
  %1592 = vmatpush1.msra.mxu0 0.0
  %1593 = vmatprep.subr.mxu0 0.0
  %1594 = vmatpush1.msra.mxu0 0.0
  %1595 = vmatprep.subr.mxu0 0.0
  %1596 = vmatpush1.msra.mxu0 0.0
  %1597 = vmatprep.subr.mxu0 0.0
  %1598 = vmatpush1.msra.mxu0 0.0
  %1599 = vmatprep.subr.mxu0 0.0
  %1600 = vmatpush1.msra.mxu0 0.0
  %1601 = vmatprep.subr.mxu0 0.0
  %1602 = vmatpush1.msra.mxu0 0.0
  %1603 = vmatprep.subr.mxu0 0.0
  %1604 = vmatpush1.msra.mxu0 0.0
  %1605 = vmatprep.subr.mxu0 0.0
  %1606 = vmatpush1.msra.mxu0 0.0
  %1607 = vmatprep.subr.mxu0 0.0
  %1608 = vmatpush1.msra.mxu0 0.0
  %1609 = vmatprep.subr.mxu0 0.0
  %1610 = vmatpush1.msra.mxu0 0.0
  %1611 = vmatprep.subr.mxu0 0.0
  %1612 = vmatpush1.msra.mxu0 0.0
  %1613 = vmatprep.mubr.f32.mxu0 0.0
  %1614 = vmatmul.mubr.f32.gmra.mrb[0].mxu0 %v1544
  %v1615 = vpop.f32.mrb[0].mxu0
  %v1616 = vadd.f32 0.0, %v1615
  %v1617 = vpop.f32.mrb[0].mxu0
  %1618 = vmatprep.mubr.f32.mxu0 0.0
  %1619 = vmatmul.mubr.f32.gmra.mrb[0].mxu0 %v1547
  %v1620 = vpop.f32.mrb[0].mxu0
  %v1621 = vadd.f32 0.0, %v1620
  %v1622 = vpop.f32.mrb[0].mxu0
  %1623 = vdwg.mxu0
  %v1625 = vsel %vm1349, %v1458, 0
  %v1628 = vsel %vm1349, %v1459, 0
  %1630 = vmatprep.subr.mxu0 0.0
  %1631 = vmatpush1.msra.mxu0 %v912
  %1632 = vmatprep.subr.mxu0 0.0
  %1633 = vmatpush1.msra.mxu0 %v917
  %1634 = vmatprep.subr.mxu0 0.0
  %1635 = vmatpush1.msra.mxu0 0.0
  %1636 = vmatprep.subr.mxu0 0.0
  %1637 = vmatpush1.msra.mxu0 0.0
  %1638 = vmatprep.subr.mxu0 0.0
  %1639 = vmatpush1.msra.mxu0 0.0
  %1640 = vmatprep.subr.mxu0 0.0
  %1641 = vmatpush1.msra.mxu0 0.0
  %1642 = vmatprep.subr.mxu0 0.0
  %1643 = vmatpush1.msra.mxu0 0.0
  %1644 = vmatprep.subr.mxu0 0.0
  %1645 = vmatpush1.msra.mxu0 0.0
  %1646 = vmatprep.subr.mxu0 0.0
  %1647 = vmatpush1.msra.mxu0 0.0
  %1648 = vmatprep.subr.mxu0 0.0
  %1649 = vmatpush1.msra.mxu0 0.0
  %1650 = vmatprep.subr.mxu0 0.0
  %1651 = vmatpush1.msra.mxu0 0.0
  %1652 = vmatprep.subr.mxu0 0.0
  %1653 = vmatpush1.msra.mxu0 0.0
  %1654 = vmatprep.subr.mxu0 0.0
  %1655 = vmatpush1.msra.mxu0 0.0
  %1656 = vmatprep.subr.mxu0 0.0
  %1657 = vmatpush1.msra.mxu0 0.0
  %1658 = vmatprep.subr.mxu0 0.0
  %1659 = vmatpush1.msra.mxu0 0.0
  %1660 = vmatprep.subr.mxu0 0.0
  %1661 = vmatpush1.msra.mxu0 0.0
  %1662 = vmatprep.subr.mxu0 0.0
  %1663 = vmatpush1.msra.mxu0 0.0
  %1664 = vmatprep.subr.mxu0 0.0
  %1665 = vmatpush1.msra.mxu0 0.0
  %1666 = vmatprep.subr.mxu0 0.0
  %1667 = vmatpush1.msra.mxu0 0.0
  %1668 = vmatprep.subr.mxu0 0.0
  %1669 = vmatpush1.msra.mxu0 0.0
  %1670 = vmatprep.subr.mxu0 0.0
  %1671 = vmatpush1.msra.mxu0 0.0
  %1672 = vmatprep.subr.mxu0 0.0
  %1673 = vmatpush1.msra.mxu0 0.0
  %1674 = vmatprep.subr.mxu0 0.0
  %1675 = vmatpush1.msra.mxu0 0.0
  %1676 = vmatprep.subr.mxu0 0.0
  %1677 = vmatpush1.msra.mxu0 0.0
  %1678 = vmatprep.subr.mxu0 0.0
  %1679 = vmatpush1.msra.mxu0 0.0
  %1680 = vmatprep.subr.mxu0 0.0
  %1681 = vmatpush1.msra.mxu0 0.0
  %1682 = vmatprep.subr.mxu0 0.0
  %1683 = vmatpush1.msra.mxu0 0.0
  %1684 = vmatprep.subr.mxu0 0.0
  %1685 = vmatpush1.msra.mxu0 0.0
  %1686 = vmatprep.subr.mxu0 0.0
  %1687 = vmatpush1.msra.mxu0 0.0
  %1688 = vmatprep.subr.mxu0 0.0
  %1689 = vmatpush1.msra.mxu0 0.0
  %1690 = vmatprep.subr.mxu0 0.0
  %1691 = vmatpush1.msra.mxu0 0.0
  %1692 = vmatprep.subr.mxu0 0.0
  %1693 = vmatpush1.msra.mxu0 0.0
  %1694 = vmatprep.mubr.f32.mxu0 0.0
  %1695 = vmatmul.mubr.f32.gmra.mrb[0].mxu0 %v1625
  %v1696 = vpop.f32.mrb[0].mxu0
  %v1697 = vadd.f32 0.0, %v1696
  %v1698 = vpop.f32.mrb[0].mxu0
  %1699 = vmatprep.mubr.f32.mxu0 0.0
  %1700 = vmatmul.mubr.f32.gmra.mrb[0].mxu0 %v1628
  %v1701 = vpop.f32.mrb[0].mxu0
  %v1702 = vadd.f32 0.0, %v1701
  %v1703 = vpop.f32.mrb[0].mxu0
  %1704 = vdwg.mxu0
  %v1706 = vsel %vm1349, %v1460, 0
  %v1709 = vsel %vm1349, %v1461, 0
  %1711 = vmatprep.subr.mxu0 0.0
  %1712 = vmatpush1.msra.mxu0 %v990
  %1713 = vmatprep.subr.mxu0 0.0
  %1714 = vmatpush1.msra.mxu0 %v995
  %1715 = vmatprep.subr.mxu0 0.0
  %1716 = vmatpush1.msra.mxu0 0.0
  %1717 = vmatprep.subr.mxu0 0.0
  %1718 = vmatpush1.msra.mxu0 0.0
  %1719 = vmatprep.subr.mxu0 0.0
  %1720 = vmatpush1.msra.mxu0 0.0
  %1721 = vmatprep.subr.mxu0 0.0
  %1722 = vmatpush1.msra.mxu0 0.0
  %1723 = vmatprep.subr.mxu0 0.0
  %1724 = vmatpush1.msra.mxu0 0.0
  %1725 = vmatprep.subr.mxu0 0.0
  %1726 = vmatpush1.msra.mxu0 0.0
  %1727 = vmatprep.subr.mxu0 0.0
  %1728 = vmatpush1.msra.mxu0 0.0
  %1729 = vmatprep.subr.mxu0 0.0
  %1730 = vmatpush1.msra.mxu0 0.0
  %1731 = vmatprep.subr.mxu0 0.0
  %1732 = vmatpush1.msra.mxu0 0.0
  %1733 = vmatprep.subr.mxu0 0.0
  %1734 = vmatpush1.msra.mxu0 0.0
  %1735 = vmatprep.subr.mxu0 0.0
  %1736 = vmatpush1.msra.mxu0 0.0
  %1737 = vmatprep.subr.mxu0 0.0
  %1738 = vmatpush1.msra.mxu0 0.0
  %1739 = vmatprep.subr.mxu0 0.0
  %1740 = vmatpush1.msra.mxu0 0.0
  %1741 = vmatprep.subr.mxu0 0.0
  %1742 = vmatpush1.msra.mxu0 0.0
  %1743 = vmatprep.subr.mxu0 0.0
  %1744 = vmatpush1.msra.mxu0 0.0
  %1745 = vmatprep.subr.mxu0 0.0
  %1746 = vmatpush1.msra.mxu0 0.0
  %1747 = vmatprep.subr.mxu0 0.0
  %1748 = vmatpush1.msra.mxu0 0.0
  %1749 = vmatprep.subr.mxu0 0.0
  %1750 = vmatpush1.msra.mxu0 0.0
  %1751 = vmatprep.subr.mxu0 0.0
  %1752 = vmatpush1.msra.mxu0 0.0
  %1753 = vmatprep.subr.mxu0 0.0
  %1754 = vmatpush1.msra.mxu0 0.0
  %1755 = vmatprep.subr.mxu0 0.0
  %1756 = vmatpush1.msra.mxu0 0.0
  %1757 = vmatprep.subr.mxu0 0.0
  %1758 = vmatpush1.msra.mxu0 0.0
  %1759 = vmatprep.subr.mxu0 0.0
  %1760 = vmatpush1.msra.mxu0 0.0
  %1761 = vmatprep.subr.mxu0 0.0
  %1762 = vmatpush1.msra.mxu0 0.0
  %1763 = vmatprep.subr.mxu0 0.0
  %1764 = vmatpush1.msra.mxu0 0.0
  %1765 = vmatprep.subr.mxu0 0.0
  %1766 = vmatpush1.msra.mxu0 0.0
  %1767 = vmatprep.subr.mxu0 0.0
  %1768 = vmatpush1.msra.mxu0 0.0
  %1769 = vmatprep.subr.mxu0 0.0
  %1770 = vmatpush1.msra.mxu0 0.0
  %1771 = vmatprep.subr.mxu0 0.0
  %1772 = vmatpush1.msra.mxu0 0.0
  %1773 = vmatprep.subr.mxu0 0.0
  %1774 = vmatpush1.msra.mxu0 0.0
  %1775 = vmatprep.mubr.f32.mxu0 0.0
  %1776 = vmatmul.mubr.f32.gmra.mrb[0].mxu0 %v1706
  %v1777 = vpop.f32.mrb[0].mxu0
  %v1778 = vadd.f32 0.0, %v1777
  %v1779 = vpop.f32.mrb[0].mxu0
  %1780 = vmatprep.mubr.f32.mxu0 0.0
  %1781 = vmatmul.mubr.f32.gmra.mrb[0].mxu0 %v1709
  %v1782 = vpop.f32.mrb[0].mxu0
  %v1783 = vadd.f32 0.0, %v1782
  %v1784 = vpop.f32.mrb[0].mxu0
  %1785 = vdwg.mxu0
  %v1787 = vsel %vm1000, %v1535, 0
  %v1790 = vsel %vm1000, %v1540, 0
  %1792 = vmatprep.subr.mxu0 0.0
  %1793 = vmatpush1.msra.mxu0 %v49
  %1794 = vmatprep.subr.mxu0 0.0
  %1795 = vmatpush1.msra.mxu0 0.0
  %1796 = vmatprep.subr.mxu0 0.0
  %1797 = vmatpush1.msra.mxu0 0.0
  %1798 = vmatprep.subr.mxu0 0.0
  %1799 = vmatpush1.msra.mxu0 0.0
  %1800 = vmatprep.subr.mxu0 0.0
  %1801 = vmatpush1.msra.mxu0 0.0
  %1802 = vmatprep.subr.mxu0 0.0
  %1803 = vmatpush1.msra.mxu0 0.0
  %1804 = vmatprep.subr.mxu0 0.0
  %1805 = vmatpush1.msra.mxu0 0.0
  %1806 = vmatprep.subr.mxu0 0.0
  %1807 = vmatpush1.msra.mxu0 0.0
  %1808 = vmatprep.subr.mxu0 0.0
  %1809 = vmatpush1.msra.mxu0 0.0
  %1810 = vmatprep.subr.mxu0 0.0
  %1811 = vmatpush1.msra.mxu0 0.0
  %1812 = vmatprep.subr.mxu0 0.0
  %1813 = vmatpush1.msra.mxu0 0.0
  %1814 = vmatprep.subr.mxu0 0.0
  %1815 = vmatpush1.msra.mxu0 0.0
  %1816 = vmatprep.subr.mxu0 0.0
  %1817 = vmatpush1.msra.mxu0 0.0
  %1818 = vmatprep.subr.mxu0 0.0
  %1819 = vmatpush1.msra.mxu0 0.0
  %1820 = vmatprep.subr.mxu0 0.0
  %1821 = vmatpush1.msra.mxu0 0.0
  %1822 = vmatprep.subr.mxu0 0.0
  %1823 = vmatpush1.msra.mxu0 0.0
  %1824 = vmatprep.subr.mxu0 0.0
  %1825 = vmatpush1.msra.mxu0 0.0
  %1826 = vmatprep.subr.mxu0 0.0
  %1827 = vmatpush1.msra.mxu0 0.0
  %1828 = vmatprep.subr.mxu0 0.0
  %1829 = vmatpush1.msra.mxu0 0.0
  %1830 = vmatprep.subr.mxu0 0.0
  %1831 = vmatpush1.msra.mxu0 0.0
  %1832 = vmatprep.subr.mxu0 0.0
  %1833 = vmatpush1.msra.mxu0 0.0
  %1834 = vmatprep.subr.mxu0 0.0
  %1835 = vmatpush1.msra.mxu0 0.0
  %1836 = vmatprep.subr.mxu0 0.0
  %1837 = vmatpush1.msra.mxu0 0.0
  %1838 = vmatprep.subr.mxu0 0.0
  %1839 = vmatpush1.msra.mxu0 0.0
  %1840 = vmatprep.subr.mxu0 0.0
  %1841 = vmatpush1.msra.mxu0 0.0
  %1842 = vmatprep.subr.mxu0 0.0
  %1843 = vmatpush1.msra.mxu0 0.0
  %1844 = vmatprep.subr.mxu0 0.0
  %1845 = vmatpush1.msra.mxu0 0.0
  %1846 = vmatprep.subr.mxu0 0.0
  %1847 = vmatpush1.msra.mxu0 0.0
  %1848 = vmatprep.subr.mxu0 0.0
  %1849 = vmatpush1.msra.mxu0 0.0
  %1850 = vmatprep.subr.mxu0 0.0
  %1851 = vmatpush1.msra.mxu0 0.0
  %1852 = vmatprep.subr.mxu0 0.0
  %1853 = vmatpush1.msra.mxu0 0.0
  %1854 = vmatprep.subr.mxu0 0.0
  %1855 = vmatpush1.msra.mxu0 0.0
  %1856 = vmatprep.mubr.f32.mxu0 0.0
  %1857 = vmatmul.mubr.f32.gmra.mrb[0].mxu0 %v1787
  %v1858 = vpop.f32.mrb[0].mxu0
  %v1859 = vadd.f32 0.0, %v1858
  %v1860 = vpop.f32.mrb[0].mxu0
  %1861 = vmatprep.mubr.f32.mxu0 0.0
  %1862 = vmatmul.mubr.f32.gmra.mrb[0].mxu0 %v1790
  %v1863 = vpop.f32.mrb[0].mxu0
  %v1864 = vadd.f32 0.0, %v1863
  %v1865 = vpop.f32.mrb[0].mxu0
  %1866 = vdwg.mxu0
  %v1868 = vsel %vm1000, %v1616, 0
  %v1871 = vsel %vm1000, %v1621, 0
  %1873 = vmatprep.subr.mxu0 0.0
  %1874 = vmatpush1.msra.mxu0 %v50
  %1875 = vmatprep.subr.mxu0 0.0
  %1876 = vmatpush1.msra.mxu0 0.0
  %1877 = vmatprep.subr.mxu0 0.0
  %1878 = vmatpush1.msra.mxu0 0.0
  %1879 = vmatprep.subr.mxu0 0.0
  %1880 = vmatpush1.msra.mxu0 0.0
  %1881 = vmatprep.subr.mxu0 0.0
  %1882 = vmatpush1.msra.mxu0 0.0
  %1883 = vmatprep.subr.mxu0 0.0
  %1884 = vmatpush1.msra.mxu0 0.0
  %1885 = vmatprep.subr.mxu0 0.0
  %1886 = vmatpush1.msra.mxu0 0.0
  %1887 = vmatprep.subr.mxu0 0.0
  %1888 = vmatpush1.msra.mxu0 0.0
  %1889 = vmatprep.subr.mxu0 0.0
  %1890 = vmatpush1.msra.mxu0 0.0
  %1891 = vmatprep.subr.mxu0 0.0
  %1892 = vmatpush1.msra.mxu0 0.0
  %1893 = vmatprep.subr.mxu0 0.0
  %1894 = vmatpush1.msra.mxu0 0.0
  %1895 = vmatprep.subr.mxu0 0.0
  %1896 = vmatpush1.msra.mxu0 0.0
  %1897 = vmatprep.subr.mxu0 0.0
  %1898 = vmatpush1.msra.mxu0 0.0
  %1899 = vmatprep.subr.mxu0 0.0
  %1900 = vmatpush1.msra.mxu0 0.0
  %1901 = vmatprep.subr.mxu0 0.0
  %1902 = vmatpush1.msra.mxu0 0.0
  %1903 = vmatprep.subr.mxu0 0.0
  %1904 = vmatpush1.msra.mxu0 0.0
  %1905 = vmatprep.subr.mxu0 0.0
  %1906 = vmatpush1.msra.mxu0 0.0
  %1907 = vmatprep.subr.mxu0 0.0
  %1908 = vmatpush1.msra.mxu0 0.0
  %1909 = vmatprep.subr.mxu0 0.0
  %1910 = vmatpush1.msra.mxu0 0.0
  %1911 = vmatprep.subr.mxu0 0.0
  %1912 = vmatpush1.msra.mxu0 0.0
  %1913 = vmatprep.subr.mxu0 0.0
  %1914 = vmatpush1.msra.mxu0 0.0
  %1915 = vmatprep.subr.mxu0 0.0
  %1916 = vmatpush1.msra.mxu0 0.0
  %1917 = vmatprep.subr.mxu0 0.0
  %1918 = vmatpush1.msra.mxu0 0.0
  %1919 = vmatprep.subr.mxu0 0.0
  %1920 = vmatpush1.msra.mxu0 0.0
  %1921 = vmatprep.subr.mxu0 0.0
  %1922 = vmatpush1.msra.mxu0 0.0
  %1923 = vmatprep.subr.mxu0 0.0
  %1924 = vmatpush1.msra.mxu0 0.0
  %1925 = vmatprep.subr.mxu0 0.0
  %1926 = vmatpush1.msra.mxu0 0.0
  %1927 = vmatprep.subr.mxu0 0.0
  %1928 = vmatpush1.msra.mxu0 0.0
  %1929 = vmatprep.subr.mxu0 0.0
  %1930 = vmatpush1.msra.mxu0 0.0
  %1931 = vmatprep.subr.mxu0 0.0
  %1932 = vmatpush1.msra.mxu0 0.0
  %1933 = vmatprep.subr.mxu0 0.0
  %1934 = vmatpush1.msra.mxu0 0.0
  %1935 = vmatprep.subr.mxu0 0.0
  %1936 = vmatpush1.msra.mxu0 0.0
  %1937 = vmatprep.mubr.f32.mxu0 0.0
  %1938 = vmatmul.mubr.f32.gmra.mrb[0].mxu0 %v1868
  %v1939 = vpop.f32.mrb[0].mxu0
  %v1940 = vadd.f32 0.0, %v1939
  %v1941 = vpop.f32.mrb[0].mxu0
  %1942 = vmatprep.mubr.f32.mxu0 0.0
  %1943 = vmatmul.mubr.f32.gmra.mrb[0].mxu0 %v1871
  %v1944 = vpop.f32.mrb[0].mxu0
  %v1945 = vadd.f32 0.0, %v1944
  %v1946 = vpop.f32.mrb[0].mxu0
  %1947 = vdwg.mxu0
  %v1949 = vsel %vm1000, %v1697, 0
  %v1952 = vsel %vm1000, %v1702, 0
  %1954 = vmatprep.subr.mxu0 0.0
  %1955 = vmatpush1.msra.mxu0 %v51
  %1956 = vmatprep.subr.mxu0 0.0
  %1957 = vmatpush1.msra.mxu0 0.0
  %1958 = vmatprep.subr.mxu0 0.0
  %1959 = vmatpush1.msra.mxu0 0.0
  %1960 = vmatprep.subr.mxu0 0.0
  %1961 = vmatpush1.msra.mxu0 0.0
  %1962 = vmatprep.subr.mxu0 0.0
  %1963 = vmatpush1.msra.mxu0 0.0
  %1964 = vmatprep.subr.mxu0 0.0
  %1965 = vmatpush1.msra.mxu0 0.0
  %1966 = vmatprep.subr.mxu0 0.0
  %1967 = vmatpush1.msra.mxu0 0.0
  %1968 = vmatprep.subr.mxu0 0.0
  %1969 = vmatpush1.msra.mxu0 0.0
  %1970 = vmatprep.subr.mxu0 0.0
  %1971 = vmatpush1.msra.mxu0 0.0
  %1972 = vmatprep.subr.mxu0 0.0
  %1973 = vmatpush1.msra.mxu0 0.0
  %1974 = vmatprep.subr.mxu0 0.0
  %1975 = vmatpush1.msra.mxu0 0.0
  %1976 = vmatprep.subr.mxu0 0.0
  %1977 = vmatpush1.msra.mxu0 0.0
  %1978 = vmatprep.subr.mxu0 0.0
  %1979 = vmatpush1.msra.mxu0 0.0
  %1980 = vmatprep.subr.mxu0 0.0
  %1981 = vmatpush1.msra.mxu0 0.0
  %1982 = vmatprep.subr.mxu0 0.0
  %1983 = vmatpush1.msra.mxu0 0.0
  %1984 = vmatprep.subr.mxu0 0.0
  %1985 = vmatpush1.msra.mxu0 0.0
  %1986 = vmatprep.subr.mxu0 0.0
  %1987 = vmatpush1.msra.mxu0 0.0
  %1988 = vmatprep.subr.mxu0 0.0
  %1989 = vmatpush1.msra.mxu0 0.0
  %1990 = vmatprep.subr.mxu0 0.0
  %1991 = vmatpush1.msra.mxu0 0.0
  %1992 = vmatprep.subr.mxu0 0.0
  %1993 = vmatpush1.msra.mxu0 0.0
  %1994 = vmatprep.subr.mxu0 0.0
  %1995 = vmatpush1.msra.mxu0 0.0
  %1996 = vmatprep.subr.mxu0 0.0
  %1997 = vmatpush1.msra.mxu0 0.0
  %1998 = vmatprep.subr.mxu0 0.0
  %1999 = vmatpush1.msra.mxu0 0.0
  %2000 = vmatprep.subr.mxu0 0.0
  %2001 = vmatpush1.msra.mxu0 0.0
  %2002 = vmatprep.subr.mxu0 0.0
  %2003 = vmatpush1.msra.mxu0 0.0
  %2004 = vmatprep.subr.mxu0 0.0
  %2005 = vmatpush1.msra.mxu0 0.0
  %2006 = vmatprep.subr.mxu0 0.0
  %2007 = vmatpush1.msra.mxu0 0.0
  %2008 = vmatprep.subr.mxu0 0.0
  %2009 = vmatpush1.msra.mxu0 0.0
  %2010 = vmatprep.subr.mxu0 0.0
  %2011 = vmatpush1.msra.mxu0 0.0
  %2012 = vmatprep.subr.mxu0 0.0
  %2013 = vmatpush1.msra.mxu0 0.0
  %2014 = vmatprep.subr.mxu0 0.0
  %2015 = vmatpush1.msra.mxu0 0.0
  %2016 = vmatprep.subr.mxu0 0.0
  %2017 = vmatpush1.msra.mxu0 0.0
  %2018 = vmatprep.mubr.f32.mxu0 0.0
  %2019 = vmatmul.mubr.f32.gmra.mrb[0].mxu0 %v1949
  %v2020 = vpop.f32.mrb[0].mxu0
  %v2021 = vadd.f32 0.0, %v2020
  %v2022 = vpop.f32.mrb[0].mxu0
  %2023 = vmatprep.mubr.f32.mxu0 0.0
  %2024 = vmatmul.mubr.f32.gmra.mrb[0].mxu0 %v1952
  %v2025 = vpop.f32.mrb[0].mxu0
  %v2026 = vadd.f32 0.0, %v2025
  %v2027 = vpop.f32.mrb[0].mxu0
  %2028 = vdwg.mxu0
  %v2030 = vsel %vm1000, %v1778, 0
  %v2033 = vsel %vm1000, %v1783, 0
  %2035 = vmatprep.subr.mxu0 0.0
  %2036 = vmatpush1.msra.mxu0 %v52
  %2037 = vmatprep.subr.mxu0 0.0
  %2038 = vmatpush1.msra.mxu0 0.0
  %2039 = vmatprep.subr.mxu0 0.0
  %2040 = vmatpush1.msra.mxu0 0.0
  %2041 = vmatprep.subr.mxu0 0.0
  %2042 = vmatpush1.msra.mxu0 0.0
  %2043 = vmatprep.subr.mxu0 0.0
  %2044 = vmatpush1.msra.mxu0 0.0
  %2045 = vmatprep.subr.mxu0 0.0
  %2046 = vmatpush1.msra.mxu0 0.0
  %2047 = vmatprep.subr.mxu0 0.0
  %2048 = vmatpush1.msra.mxu0 0.0
  %2049 = vmatprep.subr.mxu0 0.0
  %2050 = vmatpush1.msra.mxu0 0.0
  %2051 = vmatprep.subr.mxu0 0.0
  %2052 = vmatpush1.msra.mxu0 0.0
  %2053 = vmatprep.subr.mxu0 0.0
  %2054 = vmatpush1.msra.mxu0 0.0
  %2055 = vmatprep.subr.mxu0 0.0
  %2056 = vmatpush1.msra.mxu0 0.0
  %2057 = vmatprep.subr.mxu0 0.0
  %2058 = vmatpush1.msra.mxu0 0.0
  %2059 = vmatprep.subr.mxu0 0.0
  %2060 = vmatpush1.msra.mxu0 0.0
  %2061 = vmatprep.subr.mxu0 0.0
  %2062 = vmatpush1.msra.mxu0 0.0
  %2063 = vmatprep.subr.mxu0 0.0
  %2064 = vmatpush1.msra.mxu0 0.0
  %2065 = vmatprep.subr.mxu0 0.0
  %2066 = vmatpush1.msra.mxu0 0.0
  %2067 = vmatprep.subr.mxu0 0.0
  %2068 = vmatpush1.msra.mxu0 0.0
  %2069 = vmatprep.subr.mxu0 0.0
  %2070 = vmatpush1.msra.mxu0 0.0
  %2071 = vmatprep.subr.mxu0 0.0
  %2072 = vmatpush1.msra.mxu0 0.0
  %2073 = vmatprep.subr.mxu0 0.0
  %2074 = vmatpush1.msra.mxu0 0.0
  %2075 = vmatprep.subr.mxu0 0.0
  %2076 = vmatpush1.msra.mxu0 0.0
  %2077 = vmatprep.subr.mxu0 0.0
  %2078 = vmatpush1.msra.mxu0 0.0
  %2079 = vmatprep.subr.mxu0 0.0
  %2080 = vmatpush1.msra.mxu0 0.0
  %2081 = vmatprep.subr.mxu0 0.0
  %2082 = vmatpush1.msra.mxu0 0.0
  %2083 = vmatprep.subr.mxu0 0.0
  %2084 = vmatpush1.msra.mxu0 0.0
  %2085 = vmatprep.subr.mxu0 0.0
  %2086 = vmatpush1.msra.mxu0 0.0
  %2087 = vmatprep.subr.mxu0 0.0
  %2088 = vmatpush1.msra.mxu0 0.0
  %2089 = vmatprep.subr.mxu0 0.0
  %2090 = vmatpush1.msra.mxu0 0.0
  %2091 = vmatprep.subr.mxu0 0.0
  %2092 = vmatpush1.msra.mxu0 0.0
  %2093 = vmatprep.subr.mxu0 0.0
  %2094 = vmatpush1.msra.mxu0 0.0
  %2095 = vmatprep.subr.mxu0 0.0
  %2096 = vmatpush1.msra.mxu0 0.0
  %2097 = vmatprep.subr.mxu0 0.0
  %2098 = vmatpush1.msra.mxu0 0.0
  %2099 = vmatprep.mubr.f32.mxu0 0.0
  %2100 = vmatmul.mubr.f32.gmra.mrb[0].mxu0 %v2030
  %v2101 = vpop.f32.mrb[0].mxu0
  %v2102 = vadd.f32 0.0, %v2101
  %v2103 = vpop.f32.mrb[0].mxu0
  %2104 = vmatprep.mubr.f32.mxu0 0.0
  %2105 = vmatmul.mubr.f32.gmra.mrb[0].mxu0 %v2033
  %v2106 = vpop.f32.mrb[0].mxu0
  %v2107 = vadd.f32 0.0, %v2106
  %v2108 = vpop.f32.mrb[0].mxu0
  %2109 = vdwg.mxu0
  %v2110 = vld [vmem:[%s2] sm:$0xff]
  %v2111 = vld [vmem:[%s2 + $0x8] sm:$0xff]
  %v2112 = vld [vmem:[%s2 + $0x10] sm:$0xff]
  %v2113 = vld [vmem:[%s2 + $0x18] sm:$0xff]
  %v2114 = vld [vmem:[%s2 + $0x20] sm:$0x3]
  %v2115 = vld [vmem:[%s2 + $0x28] sm:$0xff]
  %v2116 = vld [vmem:[%s2 + $0x30] sm:$0xff]
  %v2117 = vld [vmem:[%s2 + $0x38] sm:$0xff]
  %v2118 = vld [vmem:[%s2 + $0x40] sm:$0xff]
  %v2119 = vld [vmem:[%s2 + $0x48] sm:$0x3]
  %v2120 = vsel %vm21, %v1859, 0.0
  %v2121 = vsel %vm21, %v1940, 0.0
  %v2122 = vadd.f32 %v2120, %v2121
  %v2123 = vsel %vm21, %v2021, 0.0
  %v2124 = vadd.f32 %v2122, %v2123
  %v2125 = vsel %vm21, %v2102, 0.0
  %v2126 = vadd.f32 %v2124, %v2125
  %v2127 = vsel %vm21, %v1864, 0.0
  %v2128 = vsel %vm21, %v1945, 0.0
  %v2129 = vadd.f32 %v2127, %v2128
  %v2130 = vsel %vm21, %v2026, 0.0
  %v2131 = vadd.f32 %v2129, %v2130
  %v2132 = vsel %vm21, %v2107, 0.0
  %v2133 = vadd.f32 %v2131, %v2132
  %v2134 = vadd.f32 %v17, %v2126
  %v2135 = vadd.f32 %v18, %v2133
  %v2136 = vlaneseq
  %v2137 = vshrl.u32 %v2136, 7
  %v2138 = vsub.s32 1, %v2137
  %v2139 = vrot.slane %v2119, %v2138
  %v2140 = vadd.f32 %v2134, %v2139
  %v2141 = vadd.f32 %v2135, %v2139
  %v2142 = vmul.f32 %v2140, %v2140
  %v2143 = vmul.f32 %v2141, %v2141
  %v2144 = vsel %vm21, %v2142, 0.0
  %2145 = vadd.xlane.f32.xlu0 %v2144
  %v2146 = vpop.xlane.xlu0 %2145
  %v2147 = vsel %vm21, %v2143, 0.0
  %2148 = vadd.xlane.f32.xlu0 %v2147
  %v2149 = vpop.xlane.xlu0 %2148
  %v2150 = vmul.f32 %v2146, %v28
  %v2151 = vmul.f32 %v2149, %v28
  %v2152 = vadd.f32 %v2150, 1e-12
  %v2153 = vadd.f32 %v2151, 1e-12
  %v2154 = vrsqrt.pop %v2152
  %v2155 = vrsqrt.pop %v2153
  %v2156 = vmul.f32 %v2140, %v2154
  %v2157 = vmul.f32 %v2141, %v2155
  %v2158 = vlaneseq
  %v2159 = vshrl.u32 %v2158, 7
  %v2160 = vsub.s32 0, %v2159
  %v2161 = vrot.slane %v2114, %v2160
  %v2163 = vsel %vm21, %v2156, 0
  %v2166 = vsel %vm21, %v2157, 0
  %2168 = vmatprep.subr.mxu0 0.0
  %2169 = vmatpush1.msra.mxu0 %v2110
  %2170 = vmatprep.subr.mxu0 0.0
  %2171 = vmatpush1.msra.mxu0 %v2111
  %2172 = vmatprep.subr.mxu0 0.0
  %2173 = vmatpush1.msra.mxu0 %v2112
  %2174 = vmatprep.subr.mxu0 0.0
  %2175 = vmatpush1.msra.mxu0 %v2113
  %2176 = vmatprep.subr.mxu0 0.0
  %2177 = vmatpush1.msra.mxu0 0.0
  %2178 = vmatprep.subr.mxu0 0.0
  %2179 = vmatpush1.msra.mxu0 0.0
  %2180 = vmatprep.subr.mxu0 0.0
  %2181 = vmatpush1.msra.mxu0 0.0
  %2182 = vmatprep.subr.mxu0 0.0
  %2183 = vmatpush1.msra.mxu0 0.0
  %2184 = vmatprep.subr.mxu0 0.0
  %2185 = vmatpush1.msra.mxu0 0.0
  %2186 = vmatprep.subr.mxu0 0.0
  %2187 = vmatpush1.msra.mxu0 0.0
  %2188 = vmatprep.subr.mxu0 0.0
  %2189 = vmatpush1.msra.mxu0 0.0
  %2190 = vmatprep.subr.mxu0 0.0
  %2191 = vmatpush1.msra.mxu0 0.0
  %2192 = vmatprep.subr.mxu0 0.0
  %2193 = vmatpush1.msra.mxu0 0.0
  %2194 = vmatprep.subr.mxu0 0.0
  %2195 = vmatpush1.msra.mxu0 0.0
  %2196 = vmatprep.subr.mxu0 0.0
  %2197 = vmatpush1.msra.mxu0 0.0
  %2198 = vmatprep.subr.mxu0 0.0
  %2199 = vmatpush1.msra.mxu0 0.0
  %2200 = vmatprep.subr.mxu0 0.0
  %2201 = vmatpush1.msra.mxu0 0.0
  %2202 = vmatprep.subr.mxu0 0.0
  %2203 = vmatpush1.msra.mxu0 0.0
  %2204 = vmatprep.subr.mxu0 0.0
  %2205 = vmatpush1.msra.mxu0 0.0
  %2206 = vmatprep.subr.mxu0 0.0
  %2207 = vmatpush1.msra.mxu0 0.0
  %2208 = vmatprep.subr.mxu0 0.0
  %2209 = vmatpush1.msra.mxu0 0.0
  %2210 = vmatprep.subr.mxu0 0.0
  %2211 = vmatpush1.msra.mxu0 0.0
  %2212 = vmatprep.subr.mxu0 0.0
  %2213 = vmatpush1.msra.mxu0 0.0
  %2214 = vmatprep.subr.mxu0 0.0
  %2215 = vmatpush1.msra.mxu0 0.0
  %2216 = vmatprep.subr.mxu0 0.0
  %2217 = vmatpush1.msra.mxu0 0.0
  %2218 = vmatprep.subr.mxu0 0.0
  %2219 = vmatpush1.msra.mxu0 0.0
  %2220 = vmatprep.subr.mxu0 0.0
  %2221 = vmatpush1.msra.mxu0 0.0
  %2222 = vmatprep.subr.mxu0 0.0
  %2223 = vmatpush1.msra.mxu0 0.0
  %2224 = vmatprep.subr.mxu0 0.0
  %2225 = vmatpush1.msra.mxu0 0.0
  %2226 = vmatprep.subr.mxu0 0.0
  %2227 = vmatpush1.msra.mxu0 0.0
  %2228 = vmatprep.subr.mxu0 0.0
  %2229 = vmatpush1.msra.mxu0 0.0
  %2230 = vmatprep.subr.mxu0 0.0
  %2231 = vmatpush1.msra.mxu0 0.0
  %2232 = vmatprep.mubr.f32.mxu0 0.0
  %2233 = vmatmul.mubr.f32.gmra.mrb[0].mxu0 %v2163
  %v2234 = vpop.f32.mrb[0].mxu0
  %v2235 = vadd.f32 %v2161, %v2234
  %v2236 = vpop.f32.mrb[0].mxu0
  %2237 = vmatprep.mubr.f32.mxu0 0.0
  %2238 = vmatmul.mubr.f32.gmra.mrb[0].mxu0 %v2166
  %v2239 = vpop.f32.mrb[0].mxu0
  %v2240 = vadd.f32 %v2161, %v2239
  %v2241 = vpop.f32.mrb[0].mxu0
  %2242 = vdwg.mxu0
  %v2243 = vmul.f32 %v2235, %v2235
  %v2244 = vmul.f32 %v2240, %v2240
  %v2245 = vmul.f32 %v2235, %v2243
  %v2246 = vmul.f32 %v2240, %v2244
  %v2247 = vmul.f32 %v2245, 0.044715
  %v2248 = vmul.f32 %v2246, 0.044715
  %v2249 = vadd.f32 %v2235, %v2247
  %v2250 = vadd.f32 %v2240, %v2248
  %v2251 = vmul.f32 %v2249, 0.7978846
  %v2252 = vmul.f32 %v2250, 0.7978846
  %v2253 = vtanh.pop %v2251
  %v2254 = vtanh.pop %v2252
  %v2255 = vadd.f32 %v2253, 1.0
  %v2256 = vadd.f32 %v2254, 1.0
  %v2257 = vmul.f32 %v2255, 0.5
  %v2258 = vmul.f32 %v2256, 0.5
  %v2259 = vmul.f32 %v2235, %v2257
  %v2260 = vmul.f32 %v2240, %v2258
  %v2261 = vlaneseq
  %v2262 = vshrl.u32 %v2261, 7
  %v2263 = vsub.s32 0, %v2262
  %v2264 = vrot.slane %v2119, %v2263
  %vm2265 = vcmask 523264
  %v2267 = vsel %vm2265, %v2259, 0
  %v2270 = vsel %vm2265, %v2260, 0
  %v2273 = vsel %vm2265, %v2115, 0
  %v2276 = vsel %vm2265, %v2116, 0
  %v2279 = vsel %vm2265, %v2117, 0
  %v2282 = vsel %vm2265, %v2118, 0
  %2284 = vmatprep.subr.mxu0 0.0
  %2285 = vmatpush1.xpose.msra.mxu0 %v2273
  %2286 = vmatprep.subr.mxu0 0.0
  %2287 = vmatpush1.xpose.msra.mxu0 %v2276
  %2288 = vmatprep.subr.mxu0 0.0
  %2289 = vmatpush1.xpose.msra.mxu0 %v2279
  %2290 = vmatprep.subr.mxu0 0.0
  %2291 = vmatpush1.xpose.msra.mxu0 %v2282
  %2292 = vmatprep.subr.mxu0 0.0
  %2293 = vmatpush1.xpose.msra.mxu0 0.0
  %2294 = vmatprep.subr.mxu0 0.0
  %2295 = vmatpush1.xpose.msra.mxu0 0.0
  %2296 = vmatprep.subr.mxu0 0.0
  %2297 = vmatpush1.xpose.msra.mxu0 0.0
  %2298 = vmatprep.subr.mxu0 0.0
  %2299 = vmatpush1.xpose.msra.mxu0 0.0
  %2300 = vmatprep.subr.mxu0 0.0
  %2301 = vmatpush1.xpose.msra.mxu0 0.0
  %2302 = vmatprep.subr.mxu0 0.0
  %2303 = vmatpush1.xpose.msra.mxu0 0.0
  %2304 = vmatprep.subr.mxu0 0.0
  %2305 = vmatpush1.xpose.msra.mxu0 0.0
  %2306 = vmatprep.subr.mxu0 0.0
  %2307 = vmatpush1.xpose.msra.mxu0 0.0
  %2308 = vmatprep.subr.mxu0 0.0
  %2309 = vmatpush1.xpose.msra.mxu0 0.0
  %2310 = vmatprep.subr.mxu0 0.0
  %2311 = vmatpush1.xpose.msra.mxu0 0.0
  %2312 = vmatprep.subr.mxu0 0.0
  %2313 = vmatpush1.xpose.msra.mxu0 0.0
  %2314 = vmatprep.subr.mxu0 0.0
  %2315 = vmatpush1.xpose.msra.mxu0 0.0
  %2316 = vmatprep.subr.mxu0 0.0
  %2317 = vmatpush1.xpose.msra.mxu0 0.0
  %2318 = vmatprep.subr.mxu0 0.0
  %2319 = vmatpush1.xpose.msra.mxu0 0.0
  %2320 = vmatprep.subr.mxu0 0.0
  %2321 = vmatpush1.xpose.msra.mxu0 0.0
  %2322 = vmatprep.subr.mxu0 0.0
  %2323 = vmatpush1.xpose.msra.mxu0 0.0
  %2324 = vmatprep.subr.mxu0 0.0
  %2325 = vmatpush1.xpose.msra.mxu0 0.0
  %2326 = vmatprep.subr.mxu0 0.0
  %2327 = vmatpush1.xpose.msra.mxu0 0.0
  %2328 = vmatprep.subr.mxu0 0.0
  %2329 = vmatpush1.xpose.msra.mxu0 0.0
  %2330 = vmatprep.subr.mxu0 0.0
  %2331 = vmatpush1.xpose.msra.mxu0 0.0
  %2332 = vmatprep.subr.mxu0 0.0
  %2333 = vmatpush1.xpose.msra.mxu0 0.0
  %2334 = vmatprep.subr.mxu0 0.0
  %2335 = vmatpush1.xpose.msra.mxu0 0.0
  %2336 = vmatprep.subr.mxu0 0.0
  %2337 = vmatpush1.xpose.msra.mxu0 0.0
  %2338 = vmatprep.subr.mxu0 0.0
  %2339 = vmatpush1.xpose.msra.mxu0 0.0
  %2340 = vmatprep.subr.mxu0 0.0
  %2341 = vmatpush1.xpose.msra.mxu0 0.0
  %2342 = vmatprep.subr.mxu0 0.0
  %2343 = vmatpush1.xpose.msra.mxu0 0.0
  %2344 = vmatprep.subr.mxu0 0.0
  %2345 = vmatpush1.xpose.msra.mxu0 0.0
  %2346 = vmatprep.subr.mxu0 0.0
  %2347 = vmatpush1.xpose.msra.mxu0 0.0
  %2348 = vmatprep.mubr.f32.mxu0 0.0
  %2349 = vmatmul.mubr.f32.gmra.mrb[0].mxu0 %v2267
  %v2350 = vpop.f32.mrb[0].mxu0
  %v2351 = vadd.f32 %v2264, %v2350
  %v2352 = vpop.f32.mrb[0].mxu0
  %2353 = vmatprep.mubr.f32.mxu0 0.0
  %2354 = vmatmul.mubr.f32.gmra.mrb[0].mxu0 %v2270
  %v2355 = vpop.f32.mrb[0].mxu0
  %v2356 = vadd.f32 %v2264, %v2355
  %v2357 = vpop.f32.mrb[0].mxu0
  %2358 = vdwg.mxu0
  %v2359 = vadd.f32 %v2140, %v2351
  %v2360 = vadd.f32 %v2141, %v2356
  %2361 = vst.msk [vmem:[%s4] sm:$0xff] %vm21, %v2359
  %2362 = vst.msk [vmem:[%s4 + $0x8] sm:$0xff] %vm21, %v2360
  // Predicated region
  $region18: #{decoder_layer.1} parent=0 // pred_check
    _
  $region19: #{decoder_layer.1} parent=0 // pred_check_branch
    %2364 = sbr.rel (0) target = $region21
  $region20: #{decoder_layer.1} parent=0 // pred_region
    _
  $region21: #{decoder_layer.1} parent=0 // pred_fallthru
    _
  // Predicated region
  $region22: #{decoder_layer.1} parent=0 // pred_check
    _
  $region23: #{decoder_layer.1} parent=0 // pred_check_branch
    %2366 = sbr.rel (0) target = $region25
  $region24: #{decoder_layer.1} parent=0 // pred_region
    _
  $region25: #{decoder_layer.1} parent=0 // pred_fallthru
    _

</llo_original>
